<compile_context>
chip_gen: v7x
topology: tpu7x:2x2x1
jax: 0.10.0
libtpu: 0.0.40
codegen_flags: <defaults>
</compile_context>

<pallas_src>
import jax
import jax.numpy as jnp
from jax.experimental import pallas as pl
from jax.experimental.pallas import tpu as pltpu


CPAD = 128  # conv2 output channels padded to a full lane width


def _flow_head_kernel(x_ref, w1_ref, b1_ref, w2_ref, b2_ref, out_ref,
                      xpad_ref, hpad_ref, col1_ref, col2_ref):
    # x_ref    : (1, H, W, Cin)  f32      unpadded NHWC input (one batch elem)
    # w1_ref   : (9*Cin, Chid)   bf16     conv1 weight, rows ordered (dy, dx, cin)
    # b1_ref   : (1, Chid)       f32
    # w2_ref   : (9*Chid, CPAD)  bf16     conv2 weight, cols >= Cout are zero
    # b2_ref   : (1, CPAD)       f32
    # out_ref  : (1, H*(W+2), CPAD) f32   flat rows r = y*(W+2)+x ; x >= W garbage
    # xpad_ref : ((H+3)*(W+2), Cin)  f32  flat zero-padded input plane (+ tail)
    # hpad_ref : ((H+3)*(W+2), Chid) f32  flat zero-padded relu(conv1) plane
    # col1_ref : (H*(W+2), 9*Cin)   bf16  im2col for conv1
    # col2_ref : (H*(W+2), 9*Chid)  bf16  im2col for conv2
    _, H, W, Cin = x_ref.shape
    Chid = b1_ref.shape[1]
    P = W + 2
    Nrow = H * P

    def zero_halo(plane_ref):
        # Zero only the halo/tail rows; the interior is rewritten every step.
        # (Done every grid step: VMEM scratch is per-core and the batch axis is
        #  'parallel', so a program_id==0 guard would be unsafe on multi-core.)
        c = plane_ref.shape[1]
        plane_ref[0:P + 1, :] = jnp.zeros((P + 1, c), plane_ref.dtype)
        gap = jnp.zeros((2, c), plane_ref.dtype)
        for y in range(H - 1):
            r = (y + 1) * P + 1 + W
            plane_ref[r:r + 2, :] = gap
        r = H * P + 1 + W
        plane_ref[r:, :] = jnp.zeros((plane_ref.shape[0] - r, c), plane_ref.dtype)

    def fill_interior(plane_ref, rows_fn):
        for y in range(H):
            r = (y + 1) * P + 1
            plane_ref[r:r + W, :] = rows_fn(y)

    def build_im2col(col_ref, plane_ref, c):
        # Tap (dy, dx) of a 3x3 / pad=1 conv is a *contiguous* row window of the
        # flat padded plane at offset dy*P + dx.  Row-wrap garbage only lands in
        # the 2 halo columns of each image row, which are never emitted.
        for dy in range(3):
            for dx in range(3):
                t = 3 * dy + dx
                s = dy * P + dx
                col_ref[:, t * c:(t + 1) * c] = (
                    plane_ref[s:s + Nrow, :].astype(jnp.bfloat16))

    # ---- stage input into the flat zero-padded plane (in-kernel padding) ----
    zero_halo(xpad_ref)
    x = x_ref[0]                                     # (H, W, Cin)
    fill_interior(xpad_ref, lambda y: x[y])

    # ---- conv1: single fused-K bf16 matmul on the MXU, f32 accumulation -----
    build_im2col(col1_ref, xpad_ref, Cin)
    h = jnp.dot(col1_ref[...], w1_ref[...], preferred_element_type=jnp.float32)
    h = jnp.maximum(h + b1_ref[...], 0.0)            # bias + ReLU, (Nrow, Chid)

    # ---- stage relu(conv1) into its flat zero-padded plane ------------------
    zero_halo(hpad_ref)
    fill_interior(hpad_ref, lambda y: h[y * P:y * P + W, :])

    # ---- conv2: single fused-K bf16 matmul, lane-dense N=CPAD output --------
    build_im2col(col2_ref, hpad_ref, Chid)
    o = jnp.dot(col2_ref[...], w2_ref[...], preferred_element_type=jnp.float32)
    out_ref[0] = (o + b2_ref[...]).astype(out_ref.dtype)   # one dense 128-lane store


def flow_head_partial(x_nchw, params, out_ch=None):
    """FlowHeadPartial.forward(x, out_ch).  x_nchw: (B, Cin, H, W) float32."""
    w1, b1, w2, b2 = params["w1"], params["b1"], params["w2"], params["b2"]
    B, Cin, H, W = x_nchw.shape

    # PKConv2d "partial kernel" semantics: conv1 weight sliced to the runtime
    # input-channel count; conv2 output channels sliced to `out_ch`.
    w1u = w1[:, :Cin]                                   # (Chid, Cin, 3, 3)
    if out_ch is None:
        out_ch = w2.shape[0]
    w2u = w2[:out_ch]                                   # (Cout, Chid, 3, 3)
    b2u = b2[:out_ch]
    Chid = w1u.shape[0]
    Cout = out_ch
    P = W + 2
    Nrow = H * P

    # NCHW -> NHWC (channels on the 128-lane axis).  Spatial padding happens
    # inside the kernel -- no wrapper-side jnp.pad / extra padded HBM copy.
    x = jnp.transpose(x_nchw, (0, 2, 3, 1)).astype(jnp.float32)

    # Weights laid out for the fused-K im2col matmuls; conv2 N padded to 128.
    w1k = (jnp.transpose(w1u, (2, 3, 1, 0))             # (3,3,Cin,Chid)
           .reshape(9 * Cin, Chid).astype(jnp.bfloat16))
    w2t = jnp.transpose(w2u, (2, 3, 1, 0))              # (3,3,Chid,Cout)
    w2k = (jnp.zeros((3, 3, Chid, CPAD), jnp.float32).at[..., :Cout].set(w2t)
           .reshape(9 * Chid, CPAD).astype(jnp.bfloat16))
    b1k = b1.reshape(1, Chid).astype(jnp.float32)
    b2k = jnp.zeros((1, CPAD), jnp.float32).at[0, :Cout].set(b2u.astype(jnp.float32))

    out_flat = pl.pallas_call(
        _flow_head_kernel,
        out_shape=jax.ShapeDtypeStruct((B, Nrow, CPAD), jnp.float32),
        grid_spec=pltpu.PrefetchScalarGridSpec(
            num_scalar_prefetch=0,
            grid=(B,),
            in_specs=[
                pl.BlockSpec((1, H, W, Cin), lambda b: (b, 0, 0, 0)),
                pl.BlockSpec((9 * Cin, Chid), lambda b: (0, 0)),
                pl.BlockSpec((1, Chid), lambda b: (0, 0)),
                pl.BlockSpec((9 * Chid, CPAD), lambda b: (0, 0)),
                pl.BlockSpec((1, CPAD), lambda b: (0, 0)),
            ],
            out_specs=pl.BlockSpec((1, Nrow, CPAD), lambda b: (b, 0, 0)),
            scratch_shapes=[
                pltpu.VMEM(((H + 3) * P, Cin), jnp.float32),     # padded input plane
                pltpu.VMEM(((H + 3) * P, Chid), jnp.float32),    # padded hidden plane
                pltpu.VMEM((Nrow, 9 * Cin), jnp.bfloat16),       # im2col for conv1
                pltpu.VMEM((Nrow, 9 * Chid), jnp.bfloat16),      # im2col for conv2
            ],
        ),
        compiler_params=pltpu.CompilerParams(
            dimension_semantics=("parallel",),
            vmem_limit_bytes=32 * 1024 * 1024,
        ),
    )(x, w1k, b1k, w2k, b2k)

    # Kernel output is lane-dense: flat rows (y*(W+2)+x) x 128 padded channels.
    # Slice the valid spatial columns / real channels and return NCHW.
    out = out_flat.reshape(B, H, P, CPAD)[:, :, :W, :Cout]
    return jnp.transpose(out, (0, 3, 1, 2))


def _reference(x, params, out_ch=None):
    """Pure-JAX reference mirroring the kernel's bf16-operand / f32-accum math."""
    f32 = jnp.float32
    rb = lambda a: a.astype(jnp.bfloat16).astype(f32)   # round-to-bf16
    w1, b1, w2, b2 = params["w1"], params["b1"], params["w2"], params["b2"]
    Cin = x.shape[1]
    w1u = w1[:, :Cin]
    if out_ch is None:
        out_ch = w2.shape[0]
    w2u, b2u = w2[:out_ch], b2[:out_ch]

    xq, w1q, w2q = rb(x), rb(w1u), rb(w2u)
    dn1 = jax.lax.conv_dimension_numbers(xq.shape, w1q.shape, ("NCHW", "OIHW", "NCHW"))
    h = jax.lax.conv_general_dilated(xq, w1q, (1, 1), ((1, 1), (1, 1)),
                                     dimension_numbers=dn1)
    h = jnp.maximum(h + b1[None, :, None, None], 0.0)
    hq = rb(h)
    dn2 = jax.lax.conv_dimension_numbers(hq.shape, w2q.shape, ("NCHW", "OIHW", "NCHW"))
    o = jax.lax.conv_general_dilated(hq, w2q, (1, 1), ((1, 1), (1, 1)),
                                     dimension_numbers=dn2)
    return o + b2u[None, :, None, None]


if __name__ == "__main__":
    key = jax.random.PRNGKey(0)
    input_dim, hidden_dim = 32, 64          # small analogue of (128, 256)
    B, H, W = 2, 8, 8

    k1, k2, k3, k4, k5 = jax.random.split(key, 5)
    params = {
        # PyTorch conv weight layout: (out_ch, in_ch, kH, kW)
        "w1": 0.1 * jax.random.normal(k1, (hidden_dim, input_dim, 3, 3), jnp.float32),
        "b1": 0.1 * jax.random.normal(k2, (hidden_dim,), jnp.float32),
        "w2": 0.1 * jax.random.normal(k3, (2, hidden_dim, 3, 3), jnp.float32),
        "b2": 0.1 * jax.random.normal(k4, (2,), jnp.float32),
    }
    x = jax.random.normal(k5, (B, input_dim, H, W), jnp.float32)

    out = jax.block_until_ready(flow_head_partial(x, params, out_ch=None))
    ref = _reference(x, params, out_ch=None)

    assert out.shape == (B, 2, H, W), out.shape
    err = float(jnp.max(jnp.abs(out - ref)))
    assert jnp.allclose(out, ref, atol=1e-2, rtol=1e-2), err

    print("KERNEL_OK")
</pallas_src>

<mosaic_0001>
module attributes {stable_mosaic.version = 11 : i64} {
  func.func @_flow_head_kernel(%arg0: i32, %arg1: memref<1x8x8x32xf32, #tpu.memory_space<vmem>>, %arg2: memref<288x64xbf16, #tpu.memory_space<vmem>>, %arg3: memref<1x64xf32, #tpu.memory_space<vmem>>, %arg4: memref<576x128xbf16, #tpu.memory_space<vmem>>, %arg5: memref<1x128xf32, #tpu.memory_space<vmem>>, %arg6: memref<1x80x128xf32, #tpu.memory_space<vmem>>, %arg7: memref<110x32xf32, #tpu.memory_space<vmem>>, %arg8: memref<110x64xf32, #tpu.memory_space<vmem>>, %arg9: memref<80x288xbf16, #tpu.memory_space<vmem>>, %arg10: memref<80x576xbf16, #tpu.memory_space<vmem>>) attributes {dimension_semantics = [#tpu.dimension_semantics<parallel>], iteration_bounds = array<i64: 2>, scalar_prefetch = 0 : i64, scratch_operands = 4 : i64, tpu.core_type = #tpu.core_type<tc>, window_params = [{transform_indices = @transform_0, window_bounds = array<i64: 1, 8, 8, 32>}, {pipeline_mode = #tpu.pipeline_mode<synchronous>, transform_indices = @transform_1, window_bounds = array<i64: 288, 64>}, {pipeline_mode = #tpu.pipeline_mode<synchronous>, transform_indices = @transform_2, window_bounds = array<i64: 1, 64>}, {pipeline_mode = #tpu.pipeline_mode<synchronous>, transform_indices = @transform_3, window_bounds = array<i64: 576, 128>}, {pipeline_mode = #tpu.pipeline_mode<synchronous>, transform_indices = @transform_4, window_bounds = array<i64: 1, 128>}, {transform_indices = @transform_5, window_bounds = array<i64: 1, 80, 128>}]} {
    %cst = arith.constant 0.000000e+00 : f32
    %0 = vector.broadcast %cst : f32 to vector<11x32xf32>
    %c0 = arith.constant 0 : index
    %c0_0 = arith.constant 0 : index
    %1 = vector.load %arg7[%c0, %c0_0] : memref<110x32xf32, #tpu.memory_space<vmem>>, vector<11x32xf32>
    tpu.vector_store %arg7[%c0, %c0_0], %0 {strides = array<i32>} : memref<110x32xf32, #tpu.memory_space<vmem>>, vector<11x32xf32>,
    %cst_1 = arith.constant 0.000000e+00 : f32
    %2 = vector.broadcast %cst_1 : f32 to vector<2x32xf32>
    %c19 = arith.constant 19 : index
    %c0_2 = arith.constant 0 : index
    %3 = vector.load %arg7[%c19, %c0_2] : memref<110x32xf32, #tpu.memory_space<vmem>>, vector<2x32xf32>
    tpu.vector_store %arg7[%c19, %c0_2], %2 {strides = array<i32>} : memref<110x32xf32, #tpu.memory_space<vmem>>, vector<2x32xf32>,
    %c29 = arith.constant 29 : index
    %c0_3 = arith.constant 0 : index
    %4 = vector.load %arg7[%c29, %c0_3] : memref<110x32xf32, #tpu.memory_space<vmem>>, vector<2x32xf32>
    tpu.vector_store %arg7[%c29, %c0_3], %2 {strides = array<i32>} : memref<110x32xf32, #tpu.memory_space<vmem>>, vector<2x32xf32>,
    %c39 = arith.constant 39 : index
    %c0_4 = arith.constant 0 : index
    %5 = vector.load %arg7[%c39, %c0_4] : memref<110x32xf32, #tpu.memory_space<vmem>>, vector<2x32xf32>
    tpu.vector_store %arg7[%c39, %c0_4], %2 {strides = array<i32>} : memref<110x32xf32, #tpu.memory_space<vmem>>, vector<2x32xf32>,
    %c49 = arith.constant 49 : index
    %c0_5 = arith.constant 0 : index
    %6 = vector.load %arg7[%c49, %c0_5] : memref<110x32xf32, #tpu.memory_space<vmem>>, vector<2x32xf32>
    tpu.vector_store %arg7[%c49, %c0_5], %2 {strides = array<i32>} : memref<110x32xf32, #tpu.memory_space<vmem>>, vector<2x32xf32>,
    %c59 = arith.constant 59 : index
    %c0_6 = arith.constant 0 : index
    %7 = vector.load %arg7[%c59, %c0_6] : memref<110x32xf32, #tpu.memory_space<vmem>>, vector<2x32xf32>
    tpu.vector_store %arg7[%c59, %c0_6], %2 {strides = array<i32>} : memref<110x32xf32, #tpu.memory_space<vmem>>, vector<2x32xf32>,
    %c69 = arith.constant 69 : index
    %c0_7 = arith.constant 0 : index
    %8 = vector.load %arg7[%c69, %c0_7] : memref<110x32xf32, #tpu.memory_space<vmem>>, vector<2x32xf32>
    tpu.vector_store %arg7[%c69, %c0_7], %2 {strides = array<i32>} : memref<110x32xf32, #tpu.memory_space<vmem>>, vector<2x32xf32>,
    %c79 = arith.constant 79 : index
    %c0_8 = arith.constant 0 : index
    %9 = vector.load %arg7[%c79, %c0_8] : memref<110x32xf32, #tpu.memory_space<vmem>>, vector<2x32xf32>
    tpu.vector_store %arg7[%c79, %c0_8], %2 {strides = array<i32>} : memref<110x32xf32, #tpu.memory_space<vmem>>, vector<2x32xf32>,
    %cst_9 = arith.constant 0.000000e+00 : f32
    %10 = vector.broadcast %cst_9 : f32 to vector<21x32xf32>
    %c89 = arith.constant 89 : index
    %c0_10 = arith.constant 0 : index
    %11 = vector.load %arg7[%c89, %c0_10] : memref<110x32xf32, #tpu.memory_space<vmem>>, vector<21x32xf32>
    tpu.vector_store %arg7[%c89, %c0_10], %10 {strides = array<i32>} : memref<110x32xf32, #tpu.memory_space<vmem>>, vector<21x32xf32>,
    %c0_11 = arith.constant 0 : index
    %c0_12 = arith.constant 0 : index
    %c0_13 = arith.constant 0 : index
    %c0_14 = arith.constant 0 : index
    %12 = vector.load %arg1[%c0_11, %c0_12, %c0_13, %c0_14] : memref<1x8x8x32xf32, #tpu.memory_space<vmem>>, vector<1x8x8x32xf32>
    %13 = vector.shape_cast %12 : vector<1x8x8x32xf32> to vector<8x8x32xf32>
    %14 = vector.extract_strided_slice %13 {offsets = [0, 0, 0], sizes = [1, 8, 32], strides = [1, 1, 1]} : vector<8x8x32xf32> to vector<1x8x32xf32>
    %15 = vector.shape_cast %14 : vector<1x8x32xf32> to vector<8x32xf32>
    %c11 = arith.constant 11 : index
    %c0_15 = arith.constant 0 : index
    %16 = vector.load %arg7[%c11, %c0_15] : memref<110x32xf32, #tpu.memory_space<vmem>>, vector<8x32xf32>
    tpu.vector_store %arg7[%c11, %c0_15], %15 {strides = array<i32>} : memref<110x32xf32, #tpu.memory_space<vmem>>, vector<8x32xf32>,
    %17 = vector.extract_strided_slice %13 {offsets = [1, 0, 0], sizes = [1, 8, 32], strides = [1, 1, 1]} : vector<8x8x32xf32> to vector<1x8x32xf32>
    %18 = vector.shape_cast %17 : vector<1x8x32xf32> to vector<8x32xf32>
    %c21 = arith.constant 21 : index
    %c0_16 = arith.constant 0 : index
    %19 = vector.load %arg7[%c21, %c0_16] : memref<110x32xf32, #tpu.memory_space<vmem>>, vector<8x32xf32>
    tpu.vector_store %arg7[%c21, %c0_16], %18 {strides = array<i32>} : memref<110x32xf32, #tpu.memory_space<vmem>>, vector<8x32xf32>,
    %20 = vector.extract_strided_slice %13 {offsets = [2, 0, 0], sizes = [1, 8, 32], strides = [1, 1, 1]} : vector<8x8x32xf32> to vector<1x8x32xf32>
    %21 = vector.shape_cast %20 : vector<1x8x32xf32> to vector<8x32xf32>
    %c31 = arith.constant 31 : index
    %c0_17 = arith.constant 0 : index
    %22 = vector.load %arg7[%c31, %c0_17] : memref<110x32xf32, #tpu.memory_space<vmem>>, vector<8x32xf32>
    tpu.vector_store %arg7[%c31, %c0_17], %21 {strides = array<i32>} : memref<110x32xf32, #tpu.memory_space<vmem>>, vector<8x32xf32>,
    %23 = vector.extract_strided_slice %13 {offsets = [3, 0, 0], sizes = [1, 8, 32], strides = [1, 1, 1]} : vector<8x8x32xf32> to vector<1x8x32xf32>
    %24 = vector.shape_cast %23 : vector<1x8x32xf32> to vector<8x32xf32>
    %c41 = arith.constant 41 : index
    %c0_18 = arith.constant 0 : index
    %25 = vector.load %arg7[%c41, %c0_18] : memref<110x32xf32, #tpu.memory_space<vmem>>, vector<8x32xf32>
    tpu.vector_store %arg7[%c41, %c0_18], %24 {strides = array<i32>} : memref<110x32xf32, #tpu.memory_space<vmem>>, vector<8x32xf32>,
    %26 = vector.extract_strided_slice %13 {offsets = [4, 0, 0], sizes = [1, 8, 32], strides = [1, 1, 1]} : vector<8x8x32xf32> to vector<1x8x32xf32>
    %27 = vector.shape_cast %26 : vector<1x8x32xf32> to vector<8x32xf32>
    %c51 = arith.constant 51 : index
    %c0_19 = arith.constant 0 : index
    %28 = vector.load %arg7[%c51, %c0_19] : memref<110x32xf32, #tpu.memory_space<vmem>>, vector<8x32xf32>
    tpu.vector_store %arg7[%c51, %c0_19], %27 {strides = array<i32>} : memref<110x32xf32, #tpu.memory_space<vmem>>, vector<8x32xf32>,
    %29 = vector.extract_strided_slice %13 {offsets = [5, 0, 0], sizes = [1, 8, 32], strides = [1, 1, 1]} : vector<8x8x32xf32> to vector<1x8x32xf32>
    %30 = vector.shape_cast %29 : vector<1x8x32xf32> to vector<8x32xf32>
    %c61 = arith.constant 61 : index
    %c0_20 = arith.constant 0 : index
    %31 = vector.load %arg7[%c61, %c0_20] : memref<110x32xf32, #tpu.memory_space<vmem>>, vector<8x32xf32>
    tpu.vector_store %arg7[%c61, %c0_20], %30 {strides = array<i32>} : memref<110x32xf32, #tpu.memory_space<vmem>>, vector<8x32xf32>,
    %32 = vector.extract_strided_slice %13 {offsets = [6, 0, 0], sizes = [1, 8, 32], strides = [1, 1, 1]} : vector<8x8x32xf32> to vector<1x8x32xf32>
    %33 = vector.shape_cast %32 : vector<1x8x32xf32> to vector<8x32xf32>
    %c71 = arith.constant 71 : index
    %c0_21 = arith.constant 0 : index
    %34 = vector.load %arg7[%c71, %c0_21] : memref<110x32xf32, #tpu.memory_space<vmem>>, vector<8x32xf32>
    tpu.vector_store %arg7[%c71, %c0_21], %33 {strides = array<i32>} : memref<110x32xf32, #tpu.memory_space<vmem>>, vector<8x32xf32>,
    %35 = vector.extract_strided_slice %13 {offsets = [7, 0, 0], sizes = [1, 8, 32], strides = [1, 1, 1]} : vector<8x8x32xf32> to vector<1x8x32xf32>
    %36 = vector.shape_cast %35 : vector<1x8x32xf32> to vector<8x32xf32>
    %c81 = arith.constant 81 : index
    %c0_22 = arith.constant 0 : index
    %37 = vector.load %arg7[%c81, %c0_22] : memref<110x32xf32, #tpu.memory_space<vmem>>, vector<8x32xf32>
    tpu.vector_store %arg7[%c81, %c0_22], %36 {strides = array<i32>} : memref<110x32xf32, #tpu.memory_space<vmem>>, vector<8x32xf32>,
    %c0_23 = arith.constant 0 : index
    %c0_24 = arith.constant 0 : index
    %38 = vector.load %arg7[%c0_23, %c0_24] : memref<110x32xf32, #tpu.memory_space<vmem>>, vector<80x32xf32>
    %39 = arith.truncf %38 : vector<80x32xf32> to vector<80x32xbf16>
    %c0_25 = arith.constant 0 : index
    %c0_26 = arith.constant 0 : index
    %40 = vector.load %arg9[%c0_25, %c0_26] : memref<80x288xbf16, #tpu.memory_space<vmem>>, vector<80x32xbf16>
    tpu.vector_store %arg9[%c0_25, %c0_26], %39 {strides = array<i32>} : memref<80x288xbf16, #tpu.memory_space<vmem>>, vector<80x32xbf16>,
    %c1 = arith.constant 1 : index
    %c0_27 = arith.constant 0 : index
    %41 = vector.load %arg7[%c1, %c0_27] : memref<110x32xf32, #tpu.memory_space<vmem>>, vector<80x32xf32>
    %42 = arith.truncf %41 : vector<80x32xf32> to vector<80x32xbf16>
    %c0_28 = arith.constant 0 : index
    %c32 = arith.constant 32 : index
    %43 = vector.load %arg9[%c0_28, %c32] : memref<80x288xbf16, #tpu.memory_space<vmem>>, vector<80x32xbf16>
    tpu.vector_store %arg9[%c0_28, %c32], %42 {strides = array<i32>} : memref<80x288xbf16, #tpu.memory_space<vmem>>, vector<80x32xbf16>,
    %c2 = arith.constant 2 : index
    %c0_29 = arith.constant 0 : index
    %44 = vector.load %arg7[%c2, %c0_29] : memref<110x32xf32, #tpu.memory_space<vmem>>, vector<80x32xf32>
    %45 = arith.truncf %44 : vector<80x32xf32> to vector<80x32xbf16>
    %c0_30 = arith.constant 0 : index
    %c64 = arith.constant 64 : index
    %46 = vector.load %arg9[%c0_30, %c64] : memref<80x288xbf16, #tpu.memory_space<vmem>>, vector<80x32xbf16>
    tpu.vector_store %arg9[%c0_30, %c64], %45 {strides = array<i32>} : memref<80x288xbf16, #tpu.memory_space<vmem>>, vector<80x32xbf16>,
    %c10 = arith.constant 10 : index
    %c0_31 = arith.constant 0 : index
    %47 = vector.load %arg7[%c10, %c0_31] : memref<110x32xf32, #tpu.memory_space<vmem>>, vector<80x32xf32>
    %48 = arith.truncf %47 : vector<80x32xf32> to vector<80x32xbf16>
    %c0_32 = arith.constant 0 : index
    %c96 = arith.constant 96 : index
    %49 = vector.load %arg9[%c0_32, %c96] : memref<80x288xbf16, #tpu.memory_space<vmem>>, vector<80x32xbf16>
    tpu.vector_store %arg9[%c0_32, %c96], %48 {strides = array<i32>} : memref<80x288xbf16, #tpu.memory_space<vmem>>, vector<80x32xbf16>,
    %c11_33 = arith.constant 11 : index
    %c0_34 = arith.constant 0 : index
    %50 = vector.load %arg7[%c11_33, %c0_34] : memref<110x32xf32, #tpu.memory_space<vmem>>, vector<80x32xf32>
    %51 = arith.truncf %50 : vector<80x32xf32> to vector<80x32xbf16>
    %c0_35 = arith.constant 0 : index
    %c128 = arith.constant 128 : index
    %52 = vector.load %arg9[%c0_35, %c128] : memref<80x288xbf16, #tpu.memory_space<vmem>>, vector<80x32xbf16>
    tpu.vector_store %arg9[%c0_35, %c128], %51 {strides = array<i32>} : memref<80x288xbf16, #tpu.memory_space<vmem>>, vector<80x32xbf16>,
    %c12 = arith.constant 12 : index
    %c0_36 = arith.constant 0 : index
    %53 = vector.load %arg7[%c12, %c0_36] : memref<110x32xf32, #tpu.memory_space<vmem>>, vector<80x32xf32>
    %54 = arith.truncf %53 : vector<80x32xf32> to vector<80x32xbf16>
    %c0_37 = arith.constant 0 : index
    %c160 = arith.constant 160 : index
    %55 = vector.load %arg9[%c0_37, %c160] : memref<80x288xbf16, #tpu.memory_space<vmem>>, vector<80x32xbf16>
    tpu.vector_store %arg9[%c0_37, %c160], %54 {strides = array<i32>} : memref<80x288xbf16, #tpu.memory_space<vmem>>, vector<80x32xbf16>,
    %c20 = arith.constant 20 : index
    %c0_38 = arith.constant 0 : index
    %56 = vector.load %arg7[%c20, %c0_38] : memref<110x32xf32, #tpu.memory_space<vmem>>, vector<80x32xf32>
    %57 = arith.truncf %56 : vector<80x32xf32> to vector<80x32xbf16>
    %c0_39 = arith.constant 0 : index
    %c192 = arith.constant 192 : index
    %58 = vector.load %arg9[%c0_39, %c192] : memref<80x288xbf16, #tpu.memory_space<vmem>>, vector<80x32xbf16>
    tpu.vector_store %arg9[%c0_39, %c192], %57 {strides = array<i32>} : memref<80x288xbf16, #tpu.memory_space<vmem>>, vector<80x32xbf16>,
    %c21_40 = arith.constant 21 : index
    %c0_41 = arith.constant 0 : index
    %59 = vector.load %arg7[%c21_40, %c0_41] : memref<110x32xf32, #tpu.memory_space<vmem>>, vector<80x32xf32>
    %60 = arith.truncf %59 : vector<80x32xf32> to vector<80x32xbf16>
    %c0_42 = arith.constant 0 : index
    %c224 = arith.constant 224 : index
    %61 = vector.load %arg9[%c0_42, %c224] : memref<80x288xbf16, #tpu.memory_space<vmem>>, vector<80x32xbf16>
    tpu.vector_store %arg9[%c0_42, %c224], %60 {strides = array<i32>} : memref<80x288xbf16, #tpu.memory_space<vmem>>, vector<80x32xbf16>,
    %c22 = arith.constant 22 : index
    %c0_43 = arith.constant 0 : index
    %62 = vector.load %arg7[%c22, %c0_43] : memref<110x32xf32, #tpu.memory_space<vmem>>, vector<80x32xf32>
    %63 = arith.truncf %62 : vector<80x32xf32> to vector<80x32xbf16>
    %c0_44 = arith.constant 0 : index
    %c256 = arith.constant 256 : index
    %64 = vector.load %arg9[%c0_44, %c256] : memref<80x288xbf16, #tpu.memory_space<vmem>>, vector<80x32xbf16>
    tpu.vector_store %arg9[%c0_44, %c256], %63 {strides = array<i32>} : memref<80x288xbf16, #tpu.memory_space<vmem>>, vector<80x32xbf16>,
    %c0_45 = arith.constant 0 : index
    %c0_46 = arith.constant 0 : index
    %65 = vector.load %arg9[%c0_45, %c0_46] : memref<80x288xbf16, #tpu.memory_space<vmem>>, vector<80x288xbf16>
    %c0_47 = arith.constant 0 : index
    %c0_48 = arith.constant 0 : index
    %66 = vector.load %arg2[%c0_47, %c0_48] : memref<288x64xbf16, #tpu.memory_space<vmem>>, vector<288x64xbf16>
    %cst_49 = arith.constant dense<0.000000e+00> : vector<80x64xf32>
    %67 = tpu.matmul %65, %66, %cst_49 {dimension_numbers = #tpu.dot_dimension_numbers<[1], [0], [0], [1], [0, 0, 1, 1], [], []>} : vector<80x288xbf16>, vector<288x64xbf16>, vector<80x64xf32> -> vector<80x64xf32>
    %c0_50 = arith.constant 0 : index
    %c0_51 = arith.constant 0 : index
    %68 = vector.load %arg3[%c0_50, %c0_51] : memref<1x64xf32, #tpu.memory_space<vmem>>, vector<1x64xf32>
    %69 = vector.broadcast %68 : vector<1x64xf32> to vector<80x64xf32>
    %70 = arith.addf %67, %69 : vector<80x64xf32>
    %cst_52 = arith.constant 0.000000e+00 : f32
    %71 = vector.broadcast %cst_52 : f32 to vector<80x64xf32>
    %72 = arith.maximumf %70, %71 : vector<80x64xf32>
    %cst_53 = arith.constant 0.000000e+00 : f32
    %73 = vector.broadcast %cst_53 : f32 to vector<11x64xf32>
    %c0_54 = arith.constant 0 : index
    %c0_55 = arith.constant 0 : index
    %74 = vector.load %arg8[%c0_54, %c0_55] : memref<110x64xf32, #tpu.memory_space<vmem>>, vector<11x64xf32>
    tpu.vector_store %arg8[%c0_54, %c0_55], %73 {strides = array<i32>} : memref<110x64xf32, #tpu.memory_space<vmem>>, vector<11x64xf32>,
    %cst_56 = arith.constant 0.000000e+00 : f32
    %75 = vector.broadcast %cst_56 : f32 to vector<2x64xf32>
    %c19_57 = arith.constant 19 : index
    %c0_58 = arith.constant 0 : index
    %76 = vector.load %arg8[%c19_57, %c0_58] : memref<110x64xf32, #tpu.memory_space<vmem>>, vector<2x64xf32>
    tpu.vector_store %arg8[%c19_57, %c0_58], %75 {strides = array<i32>} : memref<110x64xf32, #tpu.memory_space<vmem>>, vector<2x64xf32>,
    %c29_59 = arith.constant 29 : index
    %c0_60 = arith.constant 0 : index
    %77 = vector.load %arg8[%c29_59, %c0_60] : memref<110x64xf32, #tpu.memory_space<vmem>>, vector<2x64xf32>
    tpu.vector_store %arg8[%c29_59, %c0_60], %75 {strides = array<i32>} : memref<110x64xf32, #tpu.memory_space<vmem>>, vector<2x64xf32>,
    %c39_61 = arith.constant 39 : index
    %c0_62 = arith.constant 0 : index
    %78 = vector.load %arg8[%c39_61, %c0_62] : memref<110x64xf32, #tpu.memory_space<vmem>>, vector<2x64xf32>
    tpu.vector_store %arg8[%c39_61, %c0_62], %75 {strides = array<i32>} : memref<110x64xf32, #tpu.memory_space<vmem>>, vector<2x64xf32>,
    %c49_63 = arith.constant 49 : index
    %c0_64 = arith.constant 0 : index
    %79 = vector.load %arg8[%c49_63, %c0_64] : memref<110x64xf32, #tpu.memory_space<vmem>>, vector<2x64xf32>
    tpu.vector_store %arg8[%c49_63, %c0_64], %75 {strides = array<i32>} : memref<110x64xf32, #tpu.memory_space<vmem>>, vector<2x64xf32>,
    %c59_65 = arith.constant 59 : index
    %c0_66 = arith.constant 0 : index
    %80 = vector.load %arg8[%c59_65, %c0_66] : memref<110x64xf32, #tpu.memory_space<vmem>>, vector<2x64xf32>
    tpu.vector_store %arg8[%c59_65, %c0_66], %75 {strides = array<i32>} : memref<110x64xf32, #tpu.memory_space<vmem>>, vector<2x64xf32>,
    %c69_67 = arith.constant 69 : index
    %c0_68 = arith.constant 0 : index
    %81 = vector.load %arg8[%c69_67, %c0_68] : memref<110x64xf32, #tpu.memory_space<vmem>>, vector<2x64xf32>
    tpu.vector_store %arg8[%c69_67, %c0_68], %75 {strides = array<i32>} : memref<110x64xf32, #tpu.memory_space<vmem>>, vector<2x64xf32>,
    %c79_69 = arith.constant 79 : index
    %c0_70 = arith.constant 0 : index
    %82 = vector.load %arg8[%c79_69, %c0_70] : memref<110x64xf32, #tpu.memory_space<vmem>>, vector<2x64xf32>
    tpu.vector_store %arg8[%c79_69, %c0_70], %75 {strides = array<i32>} : memref<110x64xf32, #tpu.memory_space<vmem>>, vector<2x64xf32>,
    %cst_71 = arith.constant 0.000000e+00 : f32
    %83 = vector.broadcast %cst_71 : f32 to vector<21x64xf32>
    %c89_72 = arith.constant 89 : index
    %c0_73 = arith.constant 0 : index
    %84 = vector.load %arg8[%c89_72, %c0_73] : memref<110x64xf32, #tpu.memory_space<vmem>>, vector<21x64xf32>
    tpu.vector_store %arg8[%c89_72, %c0_73], %83 {strides = array<i32>} : memref<110x64xf32, #tpu.memory_space<vmem>>, vector<21x64xf32>,
    %85 = vector.extract_strided_slice %72 {offsets = [0, 0], sizes = [8, 64], strides = [1, 1]} : vector<80x64xf32> to vector<8x64xf32>
    %c11_74 = arith.constant 11 : index
    %c0_75 = arith.constant 0 : index
    %86 = vector.load %arg8[%c11_74, %c0_75] : memref<110x64xf32, #tpu.memory_space<vmem>>, vector<8x64xf32>
    tpu.vector_store %arg8[%c11_74, %c0_75], %85 {strides = array<i32>} : memref<110x64xf32, #tpu.memory_space<vmem>>, vector<8x64xf32>,
    %87 = vector.extract_strided_slice %72 {offsets = [10, 0], sizes = [8, 64], strides = [1, 1]} : vector<80x64xf32> to vector<8x64xf32>
    %c21_76 = arith.constant 21 : index
    %c0_77 = arith.constant 0 : index
    %88 = vector.load %arg8[%c21_76, %c0_77] : memref<110x64xf32, #tpu.memory_space<vmem>>, vector<8x64xf32>
    tpu.vector_store %arg8[%c21_76, %c0_77], %87 {strides = array<i32>} : memref<110x64xf32, #tpu.memory_space<vmem>>, vector<8x64xf32>,
    %89 = vector.extract_strided_slice %72 {offsets = [20, 0], sizes = [8, 64], strides = [1, 1]} : vector<80x64xf32> to vector<8x64xf32>
    %c31_78 = arith.constant 31 : index
    %c0_79 = arith.constant 0 : index
    %90 = vector.load %arg8[%c31_78, %c0_79] : memref<110x64xf32, #tpu.memory_space<vmem>>, vector<8x64xf32>
    tpu.vector_store %arg8[%c31_78, %c0_79], %89 {strides = array<i32>} : memref<110x64xf32, #tpu.memory_space<vmem>>, vector<8x64xf32>,
    %91 = vector.extract_strided_slice %72 {offsets = [30, 0], sizes = [8, 64], strides = [1, 1]} : vector<80x64xf32> to vector<8x64xf32>
    %c41_80 = arith.constant 41 : index
    %c0_81 = arith.constant 0 : index
    %92 = vector.load %arg8[%c41_80, %c0_81] : memref<110x64xf32, #tpu.memory_space<vmem>>, vector<8x64xf32>
    tpu.vector_store %arg8[%c41_80, %c0_81], %91 {strides = array<i32>} : memref<110x64xf32, #tpu.memory_space<vmem>>, vector<8x64xf32>,
    %93 = vector.extract_strided_slice %72 {offsets = [40, 0], sizes = [8, 64], strides = [1, 1]} : vector<80x64xf32> to vector<8x64xf32>
    %c51_82 = arith.constant 51 : index
    %c0_83 = arith.constant 0 : index
    %94 = vector.load %arg8[%c51_82, %c0_83] : memref<110x64xf32, #tpu.memory_space<vmem>>, vector<8x64xf32>
    tpu.vector_store %arg8[%c51_82, %c0_83], %93 {strides = array<i32>} : memref<110x64xf32, #tpu.memory_space<vmem>>, vector<8x64xf32>,
    %95 = vector.extract_strided_slice %72 {offsets = [50, 0], sizes = [8, 64], strides = [1, 1]} : vector<80x64xf32> to vector<8x64xf32>
    %c61_84 = arith.constant 61 : index
    %c0_85 = arith.constant 0 : index
    %96 = vector.load %arg8[%c61_84, %c0_85] : memref<110x64xf32, #tpu.memory_space<vmem>>, vector<8x64xf32>
    tpu.vector_store %arg8[%c61_84, %c0_85], %95 {strides = array<i32>} : memref<110x64xf32, #tpu.memory_space<vmem>>, vector<8x64xf32>,
    %97 = vector.extract_strided_slice %72 {offsets = [60, 0], sizes = [8, 64], strides = [1, 1]} : vector<80x64xf32> to vector<8x64xf32>
    %c71_86 = arith.constant 71 : index
    %c0_87 = arith.constant 0 : index
    %98 = vector.load %arg8[%c71_86, %c0_87] : memref<110x64xf32, #tpu.memory_space<vmem>>, vector<8x64xf32>
    tpu.vector_store %arg8[%c71_86, %c0_87], %97 {strides = array<i32>} : memref<110x64xf32, #tpu.memory_space<vmem>>, vector<8x64xf32>,
    %99 = vector.extract_strided_slice %72 {offsets = [70, 0], sizes = [8, 64], strides = [1, 1]} : vector<80x64xf32> to vector<8x64xf32>
    %c81_88 = arith.constant 81 : index
    %c0_89 = arith.constant 0 : index
    %100 = vector.load %arg8[%c81_88, %c0_89] : memref<110x64xf32, #tpu.memory_space<vmem>>, vector<8x64xf32>
    tpu.vector_store %arg8[%c81_88, %c0_89], %99 {strides = array<i32>} : memref<110x64xf32, #tpu.memory_space<vmem>>, vector<8x64xf32>,
    %c0_90 = arith.constant 0 : index
    %c0_91 = arith.constant 0 : index
    %101 = vector.load %arg8[%c0_90, %c0_91] : memref<110x64xf32, #tpu.memory_space<vmem>>, vector<80x64xf32>
    %102 = arith.truncf %101 : vector<80x64xf32> to vector<80x64xbf16>
    %c0_92 = arith.constant 0 : index
    %c0_93 = arith.constant 0 : index
    %103 = vector.load %arg10[%c0_92, %c0_93] : memref<80x576xbf16, #tpu.memory_space<vmem>>, vector<80x64xbf16>
    tpu.vector_store %arg10[%c0_92, %c0_93], %102 {strides = array<i32>} : memref<80x576xbf16, #tpu.memory_space<vmem>>, vector<80x64xbf16>,
    %c1_94 = arith.constant 1 : index
    %c0_95 = arith.constant 0 : index
    %104 = vector.load %arg8[%c1_94, %c0_95] : memref<110x64xf32, #tpu.memory_space<vmem>>, vector<80x64xf32>
    %105 = arith.truncf %104 : vector<80x64xf32> to vector<80x64xbf16>
    %c0_96 = arith.constant 0 : index
    %c64_97 = arith.constant 64 : index
    %106 = vector.load %arg10[%c0_96, %c64_97] : memref<80x576xbf16, #tpu.memory_space<vmem>>, vector<80x64xbf16>
    tpu.vector_store %arg10[%c0_96, %c64_97], %105 {strides = array<i32>} : memref<80x576xbf16, #tpu.memory_space<vmem>>, vector<80x64xbf16>,
    %c2_98 = arith.constant 2 : index
    %c0_99 = arith.constant 0 : index
    %107 = vector.load %arg8[%c2_98, %c0_99] : memref<110x64xf32, #tpu.memory_space<vmem>>, vector<80x64xf32>
    %108 = arith.truncf %107 : vector<80x64xf32> to vector<80x64xbf16>
    %c0_100 = arith.constant 0 : index
    %c128_101 = arith.constant 128 : index
    %109 = vector.load %arg10[%c0_100, %c128_101] : memref<80x576xbf16, #tpu.memory_space<vmem>>, vector<80x64xbf16>
    tpu.vector_store %arg10[%c0_100, %c128_101], %108 {strides = array<i32>} : memref<80x576xbf16, #tpu.memory_space<vmem>>, vector<80x64xbf16>,
    %c10_102 = arith.constant 10 : index
    %c0_103 = arith.constant 0 : index
    %110 = vector.load %arg8[%c10_102, %c0_103] : memref<110x64xf32, #tpu.memory_space<vmem>>, vector<80x64xf32>
    %111 = arith.truncf %110 : vector<80x64xf32> to vector<80x64xbf16>
    %c0_104 = arith.constant 0 : index
    %c192_105 = arith.constant 192 : index
    %112 = vector.load %arg10[%c0_104, %c192_105] : memref<80x576xbf16, #tpu.memory_space<vmem>>, vector<80x64xbf16>
    tpu.vector_store %arg10[%c0_104, %c192_105], %111 {strides = array<i32>} : memref<80x576xbf16, #tpu.memory_space<vmem>>, vector<80x64xbf16>,
    %c11_106 = arith.constant 11 : index
    %c0_107 = arith.constant 0 : index
    %113 = vector.load %arg8[%c11_106, %c0_107] : memref<110x64xf32, #tpu.memory_space<vmem>>, vector<80x64xf32>
    %114 = arith.truncf %113 : vector<80x64xf32> to vector<80x64xbf16>
    %c0_108 = arith.constant 0 : index
    %c256_109 = arith.constant 256 : index
    %115 = vector.load %arg10[%c0_108, %c256_109] : memref<80x576xbf16, #tpu.memory_space<vmem>>, vector<80x64xbf16>
    tpu.vector_store %arg10[%c0_108, %c256_109], %114 {strides = array<i32>} : memref<80x576xbf16, #tpu.memory_space<vmem>>, vector<80x64xbf16>,
    %c12_110 = arith.constant 12 : index
    %c0_111 = arith.constant 0 : index
    %116 = vector.load %arg8[%c12_110, %c0_111] : memref<110x64xf32, #tpu.memory_space<vmem>>, vector<80x64xf32>
    %117 = arith.truncf %116 : vector<80x64xf32> to vector<80x64xbf16>
    %c0_112 = arith.constant 0 : index
    %c320 = arith.constant 320 : index
    %118 = vector.load %arg10[%c0_112, %c320] : memref<80x576xbf16, #tpu.memory_space<vmem>>, vector<80x64xbf16>
    tpu.vector_store %arg10[%c0_112, %c320], %117 {strides = array<i32>} : memref<80x576xbf16, #tpu.memory_space<vmem>>, vector<80x64xbf16>,
    %c20_113 = arith.constant 20 : index
    %c0_114 = arith.constant 0 : index
    %119 = vector.load %arg8[%c20_113, %c0_114] : memref<110x64xf32, #tpu.memory_space<vmem>>, vector<80x64xf32>
    %120 = arith.truncf %119 : vector<80x64xf32> to vector<80x64xbf16>
    %c0_115 = arith.constant 0 : index
    %c384 = arith.constant 384 : index
    %121 = vector.load %arg10[%c0_115, %c384] : memref<80x576xbf16, #tpu.memory_space<vmem>>, vector<80x64xbf16>
    tpu.vector_store %arg10[%c0_115, %c384], %120 {strides = array<i32>} : memref<80x576xbf16, #tpu.memory_space<vmem>>, vector<80x64xbf16>,
    %c21_116 = arith.constant 21 : index
    %c0_117 = arith.constant 0 : index
    %122 = vector.load %arg8[%c21_116, %c0_117] : memref<110x64xf32, #tpu.memory_space<vmem>>, vector<80x64xf32>
    %123 = arith.truncf %122 : vector<80x64xf32> to vector<80x64xbf16>
    %c0_118 = arith.constant 0 : index
    %c448 = arith.constant 448 : index
    %124 = vector.load %arg10[%c0_118, %c448] : memref<80x576xbf16, #tpu.memory_space<vmem>>, vector<80x64xbf16>
    tpu.vector_store %arg10[%c0_118, %c448], %123 {strides = array<i32>} : memref<80x576xbf16, #tpu.memory_space<vmem>>, vector<80x64xbf16>,
    %c22_119 = arith.constant 22 : index
    %c0_120 = arith.constant 0 : index
    %125 = vector.load %arg8[%c22_119, %c0_120] : memref<110x64xf32, #tpu.memory_space<vmem>>, vector<80x64xf32>
    %126 = arith.truncf %125 : vector<80x64xf32> to vector<80x64xbf16>
    %c0_121 = arith.constant 0 : index
    %c512 = arith.constant 512 : index
    %127 = vector.load %arg10[%c0_121, %c512] : memref<80x576xbf16, #tpu.memory_space<vmem>>, vector<80x64xbf16>
    tpu.vector_store %arg10[%c0_121, %c512], %126 {strides = array<i32>} : memref<80x576xbf16, #tpu.memory_space<vmem>>, vector<80x64xbf16>,
    %c0_122 = arith.constant 0 : index
    %c0_123 = arith.constant 0 : index
    %128 = vector.load %arg10[%c0_122, %c0_123] : memref<80x576xbf16, #tpu.memory_space<vmem>>, vector<80x576xbf16>
    %c0_124 = arith.constant 0 : index
    %c0_125 = arith.constant 0 : index
    %129 = vector.load %arg4[%c0_124, %c0_125] : memref<576x128xbf16, #tpu.memory_space<vmem>>, vector<576x128xbf16>
    %cst_126 = arith.constant dense<0.000000e+00> : vector<80x128xf32>
    %130 = tpu.matmul %128, %129, %cst_126 {dimension_numbers = #tpu.dot_dimension_numbers<[1], [0], [0], [1], [0, 0, 1, 1], [], []>} : vector<80x576xbf16>, vector<576x128xbf16>, vector<80x128xf32> -> vector<80x128xf32>
    %c0_127 = arith.constant 0 : index
    %c0_128 = arith.constant 0 : index
    %131 = vector.load %arg5[%c0_127, %c0_128] : memref<1x128xf32, #tpu.memory_space<vmem>>, vector<1x128xf32>
    %132 = vector.broadcast %131 : vector<1x128xf32> to vector<80x128xf32>
    %133 = arith.addf %130, %132 : vector<80x128xf32>
    %c0_129 = arith.constant 0 : index
    %c0_130 = arith.constant 0 : index
    %c0_131 = arith.constant 0 : index
    %134 = vector.load %arg6[%c0_129, %c0_130, %c0_131] : memref<1x80x128xf32, #tpu.memory_space<vmem>>, vector<1x80x128xf32>
    %135 = vector.shape_cast %134 : vector<1x80x128xf32> to vector<80x128xf32>
    %136 = vector.shape_cast %133 : vector<80x128xf32> to vector<1x80x128xf32>
    tpu.vector_store %arg6[%c0_129, %c0_130, %c0_131], %136 {strides = array<i32>} : memref<1x80x128xf32, #tpu.memory_space<vmem>>, vector<1x80x128xf32>,
    return
  }
  func.func @transform_0(%arg0: i32) -> (i32, i32, i32, i32) {
    %c0_i32 = arith.constant 0 : i32
    %c0_i32_0 = arith.constant 0 : i32
    %c0_i32_1 = arith.constant 0 : i32
    %c0_i32_2 = arith.constant 0 : i32
    return %arg0, %c0_i32, %c0_i32_0, %c0_i32_1 : i32, i32, i32, i32
  }
  func.func @transform_1(%arg0: i32) -> (i32, i32) {
    %c0_i32 = arith.constant 0 : i32
    %c0_i32_0 = arith.constant 0 : i32
    %c0_i32_1 = arith.constant 0 : i32
    return %c0_i32, %c0_i32_0 : i32, i32
  }
  func.func @transform_2(%arg0: i32) -> (i32, i32) {
    %c0_i32 = arith.constant 0 : i32
    %c0_i32_0 = arith.constant 0 : i32
    %c0_i32_1 = arith.constant 0 : i32
    return %c0_i32, %c0_i32_0 : i32, i32
  }
  func.func @transform_3(%arg0: i32) -> (i32, i32) {
    %c0_i32 = arith.constant 0 : i32
    %c0_i32_0 = arith.constant 0 : i32
    %c0_i32_1 = arith.constant 0 : i32
    return %c0_i32, %c0_i32_0 : i32, i32
  }
  func.func @transform_4(%arg0: i32) -> (i32, i32) {
    %c0_i32 = arith.constant 0 : i32
    %c0_i32_0 = arith.constant 0 : i32
    %c0_i32_1 = arith.constant 0 : i32
    return %c0_i32, %c0_i32_0 : i32, i32
  }
  func.func @transform_5(%arg0: i32) -> (i32, i32, i32) {
    %c0_i32 = arith.constant 0 : i32
    %c0_i32_0 = arith.constant 0 : i32
    %c0_i32_1 = arith.constant 0 : i32
    return %arg0, %c0_i32, %c0_i32_0 : i32, i32, i32
  }
}

</mosaic_0001>

<llo_original>
// kernel: tpu_custom_call.1
$region0: #{tpu_custom_call.1}
  #allocation0 [shape = 'u32[]', space=smem, size = 0x4, offset = 0x4, fixed_abs, tag = 'smem constant byte address 0x4 - core index']
  #allocation1 [shape = 'u32[144,128]{1,0:T(1,128)}', space=vmem, size = 0x12000, scoped, tag = 'internal scratch']
  #allocation2 [shape = 'f32[110,32]{1,0:T(8,128)}', space=vmem, size = 0xe000, scoped, tag = 'scratch operand']
  #allocation3 [shape = 'f32[110,64]{1,0:T(8,128)}', space=vmem, size = 0xe000, scoped, tag = 'scratch operand']
  #allocation4 [shape = 'bf16[80,288]{1,0:T(16,128)(2,1)}', space=vmem, size = 0xf000, scoped, tag = 'scratch operand']
  #allocation5 [shape = 'bf16[80,576]{1,0:T(16,128)(2,1)}', space=vmem, size = 0x19000, scoped, tag = 'scratch operand']
  %s0 = inlined_call_operand.vmem [shape: f32[2,8,8,32], index: 0, kind: input, shape index: {}]
  %s1 = inlined_call_operand.vmem [shape: bf16[288,64], index: 1, kind: input, shape index: {}]
  %s2 = inlined_call_operand.vmem [shape: f32[1,64], index: 2, kind: input, shape index: {}]
  %s3 = inlined_call_operand.hbm [shape: bf16[576,128], index: 3, kind: input, shape index: {}]
  %s4 = inlined_call_operand.vmem [shape: f32[1,128], index: 4, kind: input, shape index: {}]
  %s5 = inlined_call_operand.hbm [shape: f32[2,80,128], index: 5, kind: output, shape index: {}]
  %s6 = sld [smem:[#allocation0]]
  $region57: #{tpu_custom_call.1} parent=0
    _
  %s8 = ssub.s32 1, %s6
  %s9 = scalar_select 0, %s8, %s6
  $region1: #{tpu_custom_call.1} parent=0
    #allocation6 [shape = 'u8[147456]{0}', space=vmem, size = 0x24000, scoped, tag = 'input window, operand 3, single buffered']
    #allocation7 [shape = 's32[2]{0}', space=sflag, size = 0x8, scoped, tag = 'scoped memory for tpu_custom_call.1']
    #allocation8 [shape = 's32[2]{0}', space=sflag, size = 0x8, scoped, tag = 'scoped memory for tpu_custom_call.1']
    #allocation9 [shape = 'u8[81920]{0}', space=vmem, size = 0x14000, scoped, tag = 'output window, operand 0']
    %10 = vsyncpa [#allocation7], 0
    %11 = vsyncpa [#allocation8], 0
    %s12 = scalar_lea.sflag [#allocation8], 1
    %13 = vsyncpa %s12, 0
    loop: start=0, step=1, limit=4
    $region2: #{tpu_custom_call.1} parent=1 // loop_pre_header
      _
    $region3: #{tpu_custom_call.1} parent=1 // loop_header
      %s15 = sphi 0, %s19
      %p16 = scmp.ge.s32.totalorder %s15, 4
      %s25 = sphi 0, %s27
      %s28 = sphi 0, %s25
      %s29 = sphi 0, %s28
      %s45 = sphi 0, %s29
      %s49 = sphi 0, %s49
      %s51 = sphi 0, %s49
      %s52 = sphi 0, %s51
      %s66 = sphi 0, %s52
      %s70 = sphi 0, %s70
      %s72 = sphi 0, %s70
      %s73 = sphi 0, %s72
      %s87 = sphi 0, %s73
      %s91 = sphi 0, %s91
      %s93 = sphi 0, %s91
      %s94 = sphi 0, %s93
      %s108 = sphi 0, %s94
      %s112 = sphi 0, %s112
      %s114 = sphi 0, %s112
      %s115 = sphi 0, %s114
      %s129 = sphi 0, %s115
      %s135 = sphi 0, %s137
      %s138 = sphi 0, %s135
      %s139 = sphi 0, %s138
      %s155 = sphi 0, %s139
    $region4: #{tpu_custom_call.1} parent=1 // loop_header_branch
      %18 = sbr.rel (%p16) target = $region8
    $region5: #{tpu_custom_call.1} parent=1 // loop_body
      %s20 = ssub.s32 %s15, 1
      %s21 = ssub.s32 %s15, 2
      %s22 = sadd.s32 %s15, 1
      %s23 = ssub.s32 %s15, %s22
      %p24 = scmp.eq.s32.totalorder %s23, 0
      %s26 = sadd.s32 %s25, 1
      %s27 = scalar_select %p24, %s25, %s26
      %p30 = pneg %p24
      %p31 = scmp.eq.s32.totalorder %s15, 1
      %p32 = por %p30, %p31
      %p33 = scmp.ne.s32.totalorder %s25, %s28
      %p34 = scmp.eq.s32.totalorder %s15, 0
      %p35 = por %p33, %p34
      %p36 = scmp.ne.s32.totalorder %s25, %s28
      %p37 = scmp.eq.s32.totalorder %s20, 1
      %p38 = por %p36, %p37
      %p39 = scmp.ne.s32.totalorder %s28, %s29
      %p40 = scmp.eq.s32.totalorder %s20, 0
      %p41 = por %p39, %p40
      %p42 = scmp.ne.s32.totalorder %s28, %s29
      %p43 = scmp.eq.s32.totalorder %s21, 1
      %p44 = por %p42, %p43
      %p46 = scmp.ne.s32.totalorder %s29, %s45
      %p47 = scmp.eq.s32.totalorder %s21, 0
      %p48 = por %p46, %p47
      %s50 = sadd.s32 %s49, 1
      %p53 = scmp.eq.s32.totalorder %s15, 1
      %p54 = scmp.ne.s32.totalorder %s49, %s51
      %p55 = scmp.eq.s32.totalorder %s15, 0
      %p56 = por %p54, %p55
      %p57 = scmp.ne.s32.totalorder %s49, %s51
      %p58 = scmp.eq.s32.totalorder %s20, 1
      %p59 = por %p57, %p58
      %p60 = scmp.ne.s32.totalorder %s51, %s52
      %p61 = scmp.eq.s32.totalorder %s20, 0
      %p62 = por %p60, %p61
      %p63 = scmp.ne.s32.totalorder %s51, %s52
      %p64 = scmp.eq.s32.totalorder %s21, 1
      %p65 = por %p63, %p64
      %p67 = scmp.ne.s32.totalorder %s52, %s66
      %p68 = scmp.eq.s32.totalorder %s21, 0
      %p69 = por %p67, %p68
      %s71 = sadd.s32 %s70, 1
      %p74 = scmp.eq.s32.totalorder %s15, 1
      %p75 = scmp.ne.s32.totalorder %s70, %s72
      %p76 = scmp.eq.s32.totalorder %s15, 0
      %p77 = por %p75, %p76
      %p78 = scmp.ne.s32.totalorder %s70, %s72
      %p79 = scmp.eq.s32.totalorder %s20, 1
      %p80 = por %p78, %p79
      %p81 = scmp.ne.s32.totalorder %s72, %s73
      %p82 = scmp.eq.s32.totalorder %s20, 0
      %p83 = por %p81, %p82
      %p84 = scmp.ne.s32.totalorder %s72, %s73
      %p85 = scmp.eq.s32.totalorder %s21, 1
      %p86 = por %p84, %p85
      %p88 = scmp.ne.s32.totalorder %s73, %s87
      %p89 = scmp.eq.s32.totalorder %s21, 0
      %p90 = por %p88, %p89
      %s92 = sadd.s32 %s91, 1
      %p95 = scmp.eq.s32.totalorder %s15, 1
      %p96 = scmp.ne.s32.totalorder %s91, %s93
      %p97 = scmp.eq.s32.totalorder %s15, 0
      %p98 = por %p96, %p97
      %p99 = scmp.ne.s32.totalorder %s91, %s93
      %p100 = scmp.eq.s32.totalorder %s20, 1
      %p101 = por %p99, %p100
      %p102 = scmp.ne.s32.totalorder %s93, %s94
      %p103 = scmp.eq.s32.totalorder %s20, 0
      %p104 = por %p102, %p103
      %p105 = scmp.ne.s32.totalorder %s93, %s94
      %p106 = scmp.eq.s32.totalorder %s21, 1
      %p107 = por %p105, %p106
      %p109 = scmp.ne.s32.totalorder %s94, %s108
      %p110 = scmp.eq.s32.totalorder %s21, 0
      %p111 = por %p109, %p110
      %s113 = sadd.s32 %s112, 1
      %p116 = scmp.eq.s32.totalorder %s15, 1
      %p117 = scmp.ne.s32.totalorder %s112, %s114
      %p118 = scmp.eq.s32.totalorder %s15, 0
      %p119 = por %p117, %p118
      %p120 = scmp.ne.s32.totalorder %s112, %s114
      %p121 = scmp.eq.s32.totalorder %s20, 1
      %p122 = por %p120, %p121
      %p123 = scmp.ne.s32.totalorder %s114, %s115
      %p124 = scmp.eq.s32.totalorder %s20, 0
      %p125 = por %p123, %p124
      %p126 = scmp.ne.s32.totalorder %s114, %s115
      %p127 = scmp.eq.s32.totalorder %s21, 1
      %p128 = por %p126, %p127
      %p130 = scmp.ne.s32.totalorder %s115, %s129
      %p131 = scmp.eq.s32.totalorder %s21, 0
      %p132 = por %p130, %p131
      %s133 = ssub.s32 %s15, %s22
      %p134 = scmp.eq.s32.totalorder %s133, 0
      %s136 = sadd.s32 %s135, 1
      %s137 = scalar_select %p134, %s135, %s136
      %p140 = pneg %p134
      %p141 = scmp.eq.s32.totalorder %s15, 1
      %p142 = por %p140, %p141
      %p143 = scmp.ne.s32.totalorder %s135, %s138
      %p144 = scmp.eq.s32.totalorder %s15, 0
      %p145 = por %p143, %p144
      %p146 = scmp.ne.s32.totalorder %s135, %s138
      %p147 = scmp.eq.s32.totalorder %s20, 1
      %p148 = por %p146, %p147
      %p149 = scmp.ne.s32.totalorder %s138, %s139
      %p150 = scmp.eq.s32.totalorder %s20, 0
      %p151 = por %p149, %p150
      %p152 = scmp.ne.s32.totalorder %s138, %s139
      %p153 = scmp.eq.s32.totalorder %s21, 1
      %p154 = por %p152, %p153
      %p156 = scmp.ne.s32.totalorder %s139, %s155
      %p157 = scmp.eq.s32.totalorder %s21, 0
      %p158 = por %p156, %p157
      %p159 = scmp.le.s32.totalorder 1, %s15
      %p160 = scmp.lt.s32.totalorder %s15, 3
      %p161 = pnand %p159, %p160
      %p162 = pneg %p161
      // Predicated region
      $region9: #{tpu_custom_call.1} parent=5 // pred_check
        _
      $region10: #{tpu_custom_call.1} parent=5 // pred_check_branch
        %164 = sbr.rel (%p161) target = $region12
      $region11: #{tpu_custom_call.1} parent=5 // pred_region
        %s165 = ssub.s32 %s15, 1
        // Predicated region
        $region13: #{tpu_custom_call.1} parent=11 // pred_check
          %p166 = pneg %p62
        $region14: #{tpu_custom_call.1} parent=11 // pred_check_branch
          %168 = sbr.rel (%p166) target = $region16
        $region15: #{tpu_custom_call.1} parent=11 // pred_region
          _
        $region16: #{tpu_custom_call.1} parent=11 // pred_fallthru
          _
        // Predicated region
        $region17: #{tpu_custom_call.1} parent=11 // pred_check
          %p169 = pneg %p83
        $region18: #{tpu_custom_call.1} parent=11 // pred_check_branch
          %171 = sbr.rel (%p169) target = $region20
        $region19: #{tpu_custom_call.1} parent=11 // pred_region
          _
        $region20: #{tpu_custom_call.1} parent=11 // pred_fallthru
          _
        // Predicated region
        $region21: #{tpu_custom_call.1} parent=11 // pred_check
          %p172 = pneg %p104
        $region22: #{tpu_custom_call.1} parent=11 // pred_check_branch
          %174 = sbr.rel (%p172) target = $region24
        $region23: #{tpu_custom_call.1} parent=11 // pred_region
          %s176 = ssub.s32 4608, 4608
          %177 = vsyncadd [#allocation7], %s176
          %s178 = sshll.u32 [#allocation6], 4
          %s179 = int_to_ptr.vmem [resolvable:$true] %s178
          %184 = dma.hbm_to_vmem [thread:$0]  %s3, 4608, %s179, [#allocation7], 64, 64, 4
        $region24: #{tpu_custom_call.1} parent=11 // pred_fallthru
          _
        // Predicated region
        $region25: #{tpu_custom_call.1} parent=11 // pred_check
          %p185 = pneg %p125
        $region26: #{tpu_custom_call.1} parent=11 // pred_check_branch
          %187 = sbr.rel (%p185) target = $region28
        $region27: #{tpu_custom_call.1} parent=11 // pred_region
          _
        $region28: #{tpu_custom_call.1} parent=11 // pred_fallthru
          _
      $region12: #{tpu_custom_call.1} parent=5 // pred_fallthru
        _
      %p188 = scmp.lt.s32.totalorder %s15, 2
      // Predicated region
      $region29: #{tpu_custom_call.1} parent=5 // pred_check
        %p189 = pneg %p188
      $region30: #{tpu_custom_call.1} parent=5 // pred_check_branch
        %191 = sbr.rel (%p189) target = $region32
      $region31: #{tpu_custom_call.1} parent=5 // pred_region
        // Predicated region
        $region33: #{tpu_custom_call.1} parent=31 // pred_check
          %p192 = pneg %p35
        $region34: #{tpu_custom_call.1} parent=31 // pred_check_branch
          %194 = sbr.rel (%p192) target = $region36
        $region35: #{tpu_custom_call.1} parent=31 // pred_region
          %p195 = scmp.lt.s32.totalorder %s15, 1
          %s196 = scalar_select %p195, %s15, 1
          %s197 = smul.addr %s196, 8
          %s198 = smul.addr %s197, 8
          %s199 = scalar_lea.vmem %s0, %s198
        $region36: #{tpu_custom_call.1} parent=31 // pred_fallthru
          _
      $region32: #{tpu_custom_call.1} parent=5 // pred_fallthru
        _
      %p200 = scmp.le.s32.totalorder 1, %s15
      %p201 = scmp.lt.s32.totalorder %s15, 3
      %p202 = pnand %p200, %p201
      %p203 = pneg %p202
      // Predicated region
      $region37: #{tpu_custom_call.1} parent=5 // pred_check
        _
      $region38: #{tpu_custom_call.1} parent=5 // pred_check_branch
        %205 = sbr.rel (%p202) target = $region40
      $region39: #{tpu_custom_call.1} parent=5 // pred_region
        %s206 = ssub.s32 %s15, 1
        // Predicated region
        $region41: #{tpu_custom_call.1} parent=39 // pred_check
          %p207 = pneg %p104
        $region42: #{tpu_custom_call.1} parent=39 // pred_check_branch
          %209 = sbr.rel (%p207) target = $region44
        $region43: #{tpu_custom_call.1} parent=39 // pred_region
          %210 = dma.done [#allocation7], 4608
        $region44: #{tpu_custom_call.1} parent=39 // pred_fallthru
          _
        %p211 = scmp.lt.s32.totalorder %s20, 1
        %s212 = scalar_select %p211, %s20, 1
        %s213 = smul.addr %s212, 8
        %s214 = smul.addr %s213, 8
        %s215 = scalar_lea.vmem %s0, %s214
        %p216 = pneg %p41
        %p217 = pneg %p38
        %p218 = pneg %p62
        %p219 = pneg %p59
        %p220 = pneg %p83
        %p221 = pneg %p80
        %p222 = pneg %p104
        %p223 = pneg %p101
        %p224 = pneg %p125
        %p225 = pneg %p122
        %p226 = pneg %p151
        %p227 = pneg %p148
        %s228 = sand.u32 %s138, 1
        %s229 = scalar_lea.sflag [#allocation8], %s228
        %s230 = sand.u32 %s138, 1
        %s231 = smul.addr %s230, 80
        %s232 = scalar_lea.vmem [#allocation9], %s231
        %p233 = scmp.lt.s32.totalorder %s20, 1
        %s234 = scalar_select %p233, %s20, 1
        %s235 = smul.addr %s234, 8
        %s236 = smul.addr %s235, 8
        %s237 = scalar_lea.vmem %s0, %s236
        %vm239 = vcmask 261120
        %240 = vst.msk [vmem:[#allocation2] sm:$0xff] %vm239, 0.0
        %vm241 = vcmask 256000
        %242 = vst.msk [vmem:[#allocation2 + $0x8] sm:$0x7] %vm241, 0.0
        %vm243 = vcmask 254976
        %244 = vst.msk [vmem:[#allocation2 + $0x13] sm:$0x3] %vm243, 0.0
        %245 = vst.msk [vmem:[#allocation2 + $0x1d] sm:$0x3] %vm243, 0.0
        %246 = vst.msk [vmem:[#allocation2 + $0x27] sm:$0x3] %vm243, 0.0
        %247 = vst.msk [vmem:[#allocation2 + $0x31] sm:$0x3] %vm243, 0.0
        %248 = vst.msk [vmem:[#allocation2 + $0x3b] sm:$0x3] %vm243, 0.0
        %249 = vst.msk [vmem:[#allocation2 + $0x45] sm:$0x3] %vm243, 0.0
        %250 = vst.msk [vmem:[#allocation2 + $0x4f] sm:$0x3] %vm243, 0.0
        %251 = vst.msk [vmem:[#allocation2 + $0x59] sm:$0xff] %vm239, 0.0
        %252 = vst.msk [vmem:[#allocation2 + $0x61] sm:$0xff] %vm239, 0.0
        %vm253 = vcmask 258048
        %254 = vst.msk [vmem:[#allocation2 + $0x69] sm:$0x1f] %vm253, 0.0
        %v255 = vld [vmem:[%s237] sm:$0xff]
        %v256 = vld [vmem:[%s237 + $0x8] sm:$0xff]
        %v257 = vld [vmem:[%s237 + $0x10] sm:$0xff]
        %v258 = vld [vmem:[%s237 + $0x18] sm:$0xff]
        %v259 = vld [vmem:[%s237 + $0x20] sm:$0xff]
        %v260 = vld [vmem:[%s237 + $0x28] sm:$0xff]
        %v261 = vld [vmem:[%s237 + $0x30] sm:$0xff]
        %v262 = vld [vmem:[%s237 + $0x38] sm:$0xff]
        %263 = vst.msk [vmem:[#allocation2 + $0xb] sm:$0xff] %vm239, %v255
        %264 = vst.msk [vmem:[#allocation2 + $0x15] sm:$0xff] %vm239, %v256
        %265 = vst.msk [vmem:[#allocation2 + $0x1f] sm:$0xff] %vm239, %v257
        %266 = vst.msk [vmem:[#allocation2 + $0x29] sm:$0xff] %vm239, %v258
        %267 = vst.msk [vmem:[#allocation2 + $0x33] sm:$0xff] %vm239, %v259
        %268 = vst.msk [vmem:[#allocation2 + $0x3d] sm:$0xff] %vm239, %v260
        %269 = vst.msk [vmem:[#allocation2 + $0x47] sm:$0xff] %vm239, %v261
        %270 = vst.msk [vmem:[#allocation2 + $0x51] sm:$0xff] %vm239, %v262
        %v271 = vld [vmem:[#allocation2] sm:$0xff]
        %v272 = vld [vmem:[#allocation2 + $0x8] sm:$0xff]
        %v273 = vld [vmem:[#allocation2 + $0x10] sm:$0xff]
        %v274 = vld [vmem:[#allocation2 + $0x18] sm:$0xff]
        %v275 = vld [vmem:[#allocation2 + $0x20] sm:$0xff]
        %v276 = vld [vmem:[#allocation2 + $0x28] sm:$0xff]
        %v277 = vld [vmem:[#allocation2 + $0x30] sm:$0xff]
        %v278 = vld [vmem:[#allocation2 + $0x38] sm:$0xff]
        %v279 = vld [vmem:[#allocation2 + $0x40] sm:$0xff]
        %v280 = vld [vmem:[#allocation2 + $0x48] sm:$0xff]
        %v281 = vpack.c.bf16 %v272, %v271
        %v282 = vpack.c.bf16 %v274, %v273
        %v283 = vpack.c.bf16 %v276, %v275
        %v284 = vpack.c.bf16 %v278, %v277
        %v285 = vpack.c.bf16 %v280, %v279
        %286 = vst.msk [vmem:[#allocation4] sm:$0xff] %vm239, %v281
        %287 = vst.msk [vmem:[#allocation4 + $0x18] sm:$0xff] %vm239, %v282
        %288 = vst.msk [vmem:[#allocation4 + $0x30] sm:$0xff] %vm239, %v283
        %289 = vst.msk [vmem:[#allocation4 + $0x48] sm:$0xff] %vm239, %v284
        %290 = vst.msk [vmem:[#allocation4 + $0x60] sm:$0xff] %vm239, %v285
        %v291 = vld [vmem:[#allocation2 + $0x1] sm:$0xff]
        %v292 = vld [vmem:[#allocation2 + $0x9] sm:$0xff]
        %v293 = vld [vmem:[#allocation2 + $0x11] sm:$0xff]
        %v294 = vld [vmem:[#allocation2 + $0x19] sm:$0xff]
        %v295 = vld [vmem:[#allocation2 + $0x21] sm:$0xff]
        %v296 = vld [vmem:[#allocation2 + $0x29] sm:$0xff]
        %v297 = vld [vmem:[#allocation2 + $0x31] sm:$0xff]
        %v298 = vld [vmem:[#allocation2 + $0x39] sm:$0xff]
        %v299 = vld [vmem:[#allocation2 + $0x41] sm:$0xff]
        %v300 = vld [vmem:[#allocation2 + $0x49] sm:$0xff]
        %v301 = vpack.c.bf16 %v292, %v291
        %v302 = vpack.c.bf16 %v294, %v293
        %v303 = vpack.c.bf16 %v296, %v295
        %v304 = vpack.c.bf16 %v298, %v297
        %v305 = vpack.c.bf16 %v300, %v299
        %311 = vrot.lane.b32.xlu0 %v301, 32
        %v312 = vpop.permute.xlu0 %311
        %313 = vrot.lane.b32.xlu0 %v302, 32
        %v314 = vpop.permute.xlu0 %313
        %315 = vrot.lane.b32.xlu0 %v303, 32
        %v316 = vpop.permute.xlu0 %315
        %317 = vrot.lane.b32.xlu0 %v304, 32
        %v318 = vpop.permute.xlu0 %317
        %319 = vrot.lane.b32.xlu0 %v305, 32
        %v320 = vpop.permute.xlu0 %319
        %vm326 = vcmask 523520
        %327 = vst.msk [vmem:[#allocation4] sm:$0xff] %vm326, %v312
        %328 = vst.msk [vmem:[#allocation4 + $0x18] sm:$0xff] %vm326, %v314
        %329 = vst.msk [vmem:[#allocation4 + $0x30] sm:$0xff] %vm326, %v316
        %330 = vst.msk [vmem:[#allocation4 + $0x48] sm:$0xff] %vm326, %v318
        %331 = vst.msk [vmem:[#allocation4 + $0x60] sm:$0xff] %vm326, %v320
        %v332 = vld [vmem:[#allocation2 + $0x2] sm:$0xff]
        %v333 = vld [vmem:[#allocation2 + $0xa] sm:$0xff]
        %v334 = vld [vmem:[#allocation2 + $0x12] sm:$0xff]
        %v335 = vld [vmem:[#allocation2 + $0x1a] sm:$0xff]
        %v336 = vld [vmem:[#allocation2 + $0x22] sm:$0xff]
        %v337 = vld [vmem:[#allocation2 + $0x2a] sm:$0xff]
        %v338 = vld [vmem:[#allocation2 + $0x32] sm:$0xff]
        %v339 = vld [vmem:[#allocation2 + $0x3a] sm:$0xff]
        %v340 = vld [vmem:[#allocation2 + $0x42] sm:$0xff]
        %v341 = vld [vmem:[#allocation2 + $0x4a] sm:$0xff]
        %v342 = vpack.c.bf16 %v333, %v332
        %v343 = vpack.c.bf16 %v335, %v334
        %v344 = vpack.c.bf16 %v337, %v336
        %v345 = vpack.c.bf16 %v339, %v338
        %v346 = vpack.c.bf16 %v341, %v340
        %352 = vrot.lane.b32.xlu0 %v342, 64
        %v353 = vpop.permute.xlu0 %352
        %354 = vrot.lane.b32.xlu0 %v343, 64
        %v355 = vpop.permute.xlu0 %354
        %356 = vrot.lane.b32.xlu0 %v344, 64
        %v357 = vpop.permute.xlu0 %356
        %358 = vrot.lane.b32.xlu0 %v345, 64
        %v359 = vpop.permute.xlu0 %358
        %360 = vrot.lane.b32.xlu0 %v346, 64
        %v361 = vpop.permute.xlu0 %360
        %vm367 = vcmask 785920
        %368 = vst.msk [vmem:[#allocation4] sm:$0xff] %vm367, %v353
        %369 = vst.msk [vmem:[#allocation4 + $0x18] sm:$0xff] %vm367, %v355
        %370 = vst.msk [vmem:[#allocation4 + $0x30] sm:$0xff] %vm367, %v357
        %371 = vst.msk [vmem:[#allocation4 + $0x48] sm:$0xff] %vm367, %v359
        %372 = vst.msk [vmem:[#allocation4 + $0x60] sm:$0xff] %vm367, %v361
        %v373 = vld [vmem:[#allocation2 + $0xa] sm:$0xff]
        %v374 = vld [vmem:[#allocation2 + $0x12] sm:$0xff]
        %v375 = vld [vmem:[#allocation2 + $0x1a] sm:$0xff]
        %v376 = vld [vmem:[#allocation2 + $0x22] sm:$0xff]
        %v377 = vld [vmem:[#allocation2 + $0x2a] sm:$0xff]
        %v378 = vld [vmem:[#allocation2 + $0x32] sm:$0xff]
        %v379 = vld [vmem:[#allocation2 + $0x3a] sm:$0xff]
        %v380 = vld [vmem:[#allocation2 + $0x42] sm:$0xff]
        %v381 = vld [vmem:[#allocation2 + $0x4a] sm:$0xff]
        %v382 = vld [vmem:[#allocation2 + $0x52] sm:$0xff]
        %v383 = vpack.c.bf16 %v374, %v373
        %v384 = vpack.c.bf16 %v376, %v375
        %v385 = vpack.c.bf16 %v378, %v377
        %v386 = vpack.c.bf16 %v380, %v379
        %v387 = vpack.c.bf16 %v382, %v381
        %393 = vrot.lane.b32.xlu0 %v383, 96
        %v394 = vpop.permute.xlu0 %393
        %395 = vrot.lane.b32.xlu0 %v384, 96
        %v396 = vpop.permute.xlu0 %395
        %397 = vrot.lane.b32.xlu0 %v385, 96
        %v398 = vpop.permute.xlu0 %397
        %399 = vrot.lane.b32.xlu0 %v386, 96
        %v400 = vpop.permute.xlu0 %399
        %401 = vrot.lane.b32.xlu0 %v387, 96
        %v402 = vpop.permute.xlu0 %401
        %vm408 = vcmask 1048320
        %409 = vst.msk [vmem:[#allocation4] sm:$0xff] %vm408, %v394
        %410 = vst.msk [vmem:[#allocation4 + $0x18] sm:$0xff] %vm408, %v396
        %411 = vst.msk [vmem:[#allocation4 + $0x30] sm:$0xff] %vm408, %v398
        %412 = vst.msk [vmem:[#allocation4 + $0x48] sm:$0xff] %vm408, %v400
        %413 = vst.msk [vmem:[#allocation4 + $0x60] sm:$0xff] %vm408, %v402
        %v414 = vld [vmem:[#allocation2 + $0xb] sm:$0xff]
        %v415 = vld [vmem:[#allocation2 + $0x13] sm:$0xff]
        %v416 = vld [vmem:[#allocation2 + $0x1b] sm:$0xff]
        %v417 = vld [vmem:[#allocation2 + $0x23] sm:$0xff]
        %v418 = vld [vmem:[#allocation2 + $0x2b] sm:$0xff]
        %v419 = vld [vmem:[#allocation2 + $0x33] sm:$0xff]
        %v420 = vld [vmem:[#allocation2 + $0x3b] sm:$0xff]
        %v421 = vld [vmem:[#allocation2 + $0x43] sm:$0xff]
        %v422 = vld [vmem:[#allocation2 + $0x4b] sm:$0xff]
        %v423 = vld [vmem:[#allocation2 + $0x53] sm:$0xff]
        %v424 = vpack.c.bf16 %v415, %v414
        %v425 = vpack.c.bf16 %v417, %v416
        %v426 = vpack.c.bf16 %v419, %v418
        %v427 = vpack.c.bf16 %v421, %v420
        %v428 = vpack.c.bf16 %v423, %v422
        %429 = vst.msk [vmem:[#allocation4 + $0x8] sm:$0xff] %vm239, %v424
        %430 = vst.msk [vmem:[#allocation4 + $0x20] sm:$0xff] %vm239, %v425
        %431 = vst.msk [vmem:[#allocation4 + $0x38] sm:$0xff] %vm239, %v426
        %432 = vst.msk [vmem:[#allocation4 + $0x50] sm:$0xff] %vm239, %v427
        %433 = vst.msk [vmem:[#allocation4 + $0x68] sm:$0xff] %vm239, %v428
        %v434 = vld [vmem:[#allocation2 + $0xc] sm:$0xff]
        %v435 = vld [vmem:[#allocation2 + $0x14] sm:$0xff]
        %v436 = vld [vmem:[#allocation2 + $0x1c] sm:$0xff]
        %v437 = vld [vmem:[#allocation2 + $0x24] sm:$0xff]
        %v438 = vld [vmem:[#allocation2 + $0x2c] sm:$0xff]
        %v439 = vld [vmem:[#allocation2 + $0x34] sm:$0xff]
        %v440 = vld [vmem:[#allocation2 + $0x3c] sm:$0xff]
        %v441 = vld [vmem:[#allocation2 + $0x44] sm:$0xff]
        %v442 = vld [vmem:[#allocation2 + $0x4c] sm:$0xff]
        %v443 = vld [vmem:[#allocation2 + $0x54] sm:$0xff]
        %v444 = vpack.c.bf16 %v435, %v434
        %v445 = vpack.c.bf16 %v437, %v436
        %v446 = vpack.c.bf16 %v439, %v438
        %v447 = vpack.c.bf16 %v441, %v440
        %v448 = vpack.c.bf16 %v443, %v442
        %454 = vrot.lane.b32.xlu0 %v444, 32
        %v455 = vpop.permute.xlu0 %454
        %456 = vrot.lane.b32.xlu0 %v445, 32
        %v457 = vpop.permute.xlu0 %456
        %458 = vrot.lane.b32.xlu0 %v446, 32
        %v459 = vpop.permute.xlu0 %458
        %460 = vrot.lane.b32.xlu0 %v447, 32
        %v461 = vpop.permute.xlu0 %460
        %462 = vrot.lane.b32.xlu0 %v448, 32
        %v463 = vpop.permute.xlu0 %462
        %469 = vst.msk [vmem:[#allocation4 + $0x8] sm:$0xff] %vm326, %v455
        %470 = vst.msk [vmem:[#allocation4 + $0x20] sm:$0xff] %vm326, %v457
        %471 = vst.msk [vmem:[#allocation4 + $0x38] sm:$0xff] %vm326, %v459
        %472 = vst.msk [vmem:[#allocation4 + $0x50] sm:$0xff] %vm326, %v461
        %473 = vst.msk [vmem:[#allocation4 + $0x68] sm:$0xff] %vm326, %v463
        %v474 = vld [vmem:[#allocation2 + $0x14] sm:$0xff]
        %v475 = vld [vmem:[#allocation2 + $0x1c] sm:$0xff]
        %v476 = vld [vmem:[#allocation2 + $0x24] sm:$0xff]
        %v477 = vld [vmem:[#allocation2 + $0x2c] sm:$0xff]
        %v478 = vld [vmem:[#allocation2 + $0x34] sm:$0xff]
        %v479 = vld [vmem:[#allocation2 + $0x3c] sm:$0xff]
        %v480 = vld [vmem:[#allocation2 + $0x44] sm:$0xff]
        %v481 = vld [vmem:[#allocation2 + $0x4c] sm:$0xff]
        %v482 = vld [vmem:[#allocation2 + $0x54] sm:$0xff]
        %v483 = vld [vmem:[#allocation2 + $0x5c] sm:$0xff]
        %v484 = vpack.c.bf16 %v475, %v474
        %v485 = vpack.c.bf16 %v477, %v476
        %v486 = vpack.c.bf16 %v479, %v478
        %v487 = vpack.c.bf16 %v481, %v480
        %v488 = vpack.c.bf16 %v483, %v482
        %494 = vrot.lane.b32.xlu0 %v484, 64
        %v495 = vpop.permute.xlu0 %494
        %496 = vrot.lane.b32.xlu0 %v485, 64
        %v497 = vpop.permute.xlu0 %496
        %498 = vrot.lane.b32.xlu0 %v486, 64
        %v499 = vpop.permute.xlu0 %498
        %500 = vrot.lane.b32.xlu0 %v487, 64
        %v501 = vpop.permute.xlu0 %500
        %502 = vrot.lane.b32.xlu0 %v488, 64
        %v503 = vpop.permute.xlu0 %502
        %509 = vst.msk [vmem:[#allocation4 + $0x8] sm:$0xff] %vm367, %v495
        %510 = vst.msk [vmem:[#allocation4 + $0x20] sm:$0xff] %vm367, %v497
        %511 = vst.msk [vmem:[#allocation4 + $0x38] sm:$0xff] %vm367, %v499
        %512 = vst.msk [vmem:[#allocation4 + $0x50] sm:$0xff] %vm367, %v501
        %513 = vst.msk [vmem:[#allocation4 + $0x68] sm:$0xff] %vm367, %v503
        %v514 = vld [vmem:[#allocation2 + $0x15] sm:$0xff]
        %v515 = vld [vmem:[#allocation2 + $0x1d] sm:$0xff]
        %v516 = vld [vmem:[#allocation2 + $0x25] sm:$0xff]
        %v517 = vld [vmem:[#allocation2 + $0x2d] sm:$0xff]
        %v518 = vld [vmem:[#allocation2 + $0x35] sm:$0xff]
        %v519 = vld [vmem:[#allocation2 + $0x3d] sm:$0xff]
        %v520 = vld [vmem:[#allocation2 + $0x45] sm:$0xff]
        %v521 = vld [vmem:[#allocation2 + $0x4d] sm:$0xff]
        %v522 = vld [vmem:[#allocation2 + $0x55] sm:$0xff]
        %v523 = vld [vmem:[#allocation2 + $0x5d] sm:$0xff]
        %v524 = vpack.c.bf16 %v515, %v514
        %v525 = vpack.c.bf16 %v517, %v516
        %v526 = vpack.c.bf16 %v519, %v518
        %v527 = vpack.c.bf16 %v521, %v520
        %v528 = vpack.c.bf16 %v523, %v522
        %534 = vrot.lane.b32.xlu0 %v524, 96
        %v535 = vpop.permute.xlu0 %534
        %536 = vrot.lane.b32.xlu0 %v525, 96
        %v537 = vpop.permute.xlu0 %536
        %538 = vrot.lane.b32.xlu0 %v526, 96
        %v539 = vpop.permute.xlu0 %538
        %540 = vrot.lane.b32.xlu0 %v527, 96
        %v541 = vpop.permute.xlu0 %540
        %542 = vrot.lane.b32.xlu0 %v528, 96
        %v543 = vpop.permute.xlu0 %542
        %549 = vst.msk [vmem:[#allocation4 + $0x8] sm:$0xff] %vm408, %v535
        %550 = vst.msk [vmem:[#allocation4 + $0x20] sm:$0xff] %vm408, %v537
        %551 = vst.msk [vmem:[#allocation4 + $0x38] sm:$0xff] %vm408, %v539
        %552 = vst.msk [vmem:[#allocation4 + $0x50] sm:$0xff] %vm408, %v541
        %553 = vst.msk [vmem:[#allocation4 + $0x68] sm:$0xff] %vm408, %v543
        %v554 = vld [vmem:[#allocation2 + $0x16] sm:$0xff]
        %v555 = vld [vmem:[#allocation2 + $0x1e] sm:$0xff]
        %v556 = vld [vmem:[#allocation2 + $0x26] sm:$0xff]
        %v557 = vld [vmem:[#allocation2 + $0x2e] sm:$0xff]
        %v558 = vld [vmem:[#allocation2 + $0x36] sm:$0xff]
        %v559 = vld [vmem:[#allocation2 + $0x3e] sm:$0xff]
        %v560 = vld [vmem:[#allocation2 + $0x46] sm:$0xff]
        %v561 = vld [vmem:[#allocation2 + $0x4e] sm:$0xff]
        %v562 = vld [vmem:[#allocation2 + $0x56] sm:$0xff]
        %v563 = vld [vmem:[#allocation2 + $0x5e] sm:$0xff]
        %v564 = vpack.c.bf16 %v555, %v554
        %v565 = vpack.c.bf16 %v557, %v556
        %v566 = vpack.c.bf16 %v559, %v558
        %v567 = vpack.c.bf16 %v561, %v560
        %v568 = vpack.c.bf16 %v563, %v562
        %569 = vst.msk [vmem:[#allocation4 + $0x10] sm:$0xff] %vm239, %v564
        %570 = vst.msk [vmem:[#allocation4 + $0x28] sm:$0xff] %vm239, %v565
        %571 = vst.msk [vmem:[#allocation4 + $0x40] sm:$0xff] %vm239, %v566
        %572 = vst.msk [vmem:[#allocation4 + $0x58] sm:$0xff] %vm239, %v567
        %573 = vst.msk [vmem:[#allocation4 + $0x70] sm:$0xff] %vm239, %v568
        %v574 = vld [vmem:[#allocation4] sm:$0xff]
        %v575 = vld [vmem:[#allocation4 + $0x8] sm:$0xff]
        %v576 = vld [vmem:[#allocation4 + $0x10] sm:$0xff]
        %v577 = vld [vmem:[#allocation4 + $0x18] sm:$0xff]
        %v578 = vld [vmem:[#allocation4 + $0x20] sm:$0xff]
        %v579 = vld [vmem:[#allocation4 + $0x28] sm:$0xff]
        %v580 = vld [vmem:[#allocation4 + $0x30] sm:$0xff]
        %v581 = vld [vmem:[#allocation4 + $0x38] sm:$0xff]
        %v582 = vld [vmem:[#allocation4 + $0x40] sm:$0xff]
        %v583 = vld [vmem:[#allocation4 + $0x48] sm:$0xff]
        %v584 = vld [vmem:[#allocation4 + $0x50] sm:$0xff]
        %v585 = vld [vmem:[#allocation4 + $0x58] sm:$0xff]
        %v586 = vld [vmem:[#allocation4 + $0x60] sm:$0xff]
        %v587 = vld [vmem:[#allocation4 + $0x68] sm:$0xff]
        %v588 = vld [vmem:[#allocation4 + $0x70] sm:$0xff]
        %v589 = vld [vmem:[%s1] sm:$0xf]
        %v590 = vld [vmem:[%s1 + $0x4] sm:$0xf]
        %v591 = vld [vmem:[%s1 + $0x8] sm:$0xf]
        %v592 = vld [vmem:[%s1 + $0xc] sm:$0xf]
        %v593 = vld [vmem:[%s1 + $0x10] sm:$0xf]
        %v594 = vld [vmem:[%s1 + $0x14] sm:$0xf]
        %v595 = vld [vmem:[%s1 + $0x18] sm:$0xf]
        %v596 = vld [vmem:[%s1 + $0x1c] sm:$0xf]
        %v597 = vld [vmem:[%s1 + $0x20] sm:$0xf]
        %v598 = vld [vmem:[%s1 + $0x24] sm:$0xf]
        %v599 = vld [vmem:[%s1 + $0x28] sm:$0xf]
        %v600 = vld [vmem:[%s1 + $0x2c] sm:$0xf]
        %v601 = vld [vmem:[%s1 + $0x30] sm:$0xf]
        %v602 = vld [vmem:[%s1 + $0x34] sm:$0xf]
        %v603 = vld [vmem:[%s1 + $0x38] sm:$0xf]
        %v604 = vld [vmem:[%s1 + $0x3c] sm:$0xf]
        %v605 = vld [vmem:[%s1 + $0x40] sm:$0xf]
        %v606 = vld [vmem:[%s1 + $0x44] sm:$0xf]
        %v607 = vld [vmem:[%s1 + $0x48] sm:$0xf]
        %v608 = vld [vmem:[%s1 + $0x4c] sm:$0xf]
        %v609 = vld [vmem:[%s1 + $0x50] sm:$0xf]
        %v610 = vld [vmem:[%s1 + $0x54] sm:$0xf]
        %v611 = vld [vmem:[%s1 + $0x58] sm:$0xf]
        %v612 = vld [vmem:[%s1 + $0x5c] sm:$0xf]
        %v613 = vld [vmem:[%s1 + $0x60] sm:$0xf]
        %v614 = vld [vmem:[%s1 + $0x64] sm:$0xf]
        %v615 = vld [vmem:[%s1 + $0x68] sm:$0xf]
        %v616 = vld [vmem:[%s1 + $0x6c] sm:$0xf]
        %v617 = vld [vmem:[%s1 + $0x70] sm:$0xf]
        %v618 = vld [vmem:[%s1 + $0x74] sm:$0xf]
        %v619 = vld [vmem:[%s1 + $0x78] sm:$0xf]
        %v620 = vld [vmem:[%s1 + $0x7c] sm:$0xf]
        %v621 = vld [vmem:[%s1 + $0x80] sm:$0xf]
        %v622 = vld [vmem:[%s1 + $0x84] sm:$0xf]
        %v623 = vld [vmem:[%s1 + $0x88] sm:$0xf]
        %v624 = vld [vmem:[%s1 + $0x8c] sm:$0xf]
        %v625 = vld [vmem:[%s2] sm:$0x1]
        %v627 = vlaneseq
        %v628 = vshrl.u32 %v627, 7
        %v629 = vsub.s32 0, %v628
        %v630 = vrot.slane %v625, %v629
        %v668 = vunpack.c.l.b16 %v589
        %v669 = vunpack.c.l.b16 %v590
        %v670 = vunpack.c.l.b16 %v591
        %v671 = vunpack.c.l.b16 %v592
        %v672 = vunpack.c.l.b16 %v593
        %v673 = vunpack.c.l.b16 %v594
        %v674 = vunpack.c.l.b16 %v595
        %v675 = vunpack.c.l.b16 %v596
        %v676 = vunpack.c.l.b16 %v597
        %v677 = vunpack.c.l.b16 %v598
        %v678 = vunpack.c.l.b16 %v599
        %v679 = vunpack.c.l.b16 %v600
        %v680 = vunpack.c.l.b16 %v601
        %v681 = vunpack.c.l.b16 %v602
        %v682 = vunpack.c.l.b16 %v603
        %v683 = vunpack.c.l.b16 %v604
        %v684 = vunpack.c.l.b16 %v605
        %v685 = vunpack.c.l.b16 %v606
        %v686 = vunpack.c.l.b16 %v607
        %v687 = vunpack.c.l.b16 %v608
        %v688 = vunpack.c.l.b16 %v609
        %v689 = vunpack.c.l.b16 %v610
        %v690 = vunpack.c.l.b16 %v611
        %v691 = vunpack.c.l.b16 %v612
        %v692 = vunpack.c.l.b16 %v613
        %v693 = vunpack.c.l.b16 %v614
        %v694 = vunpack.c.l.b16 %v615
        %v695 = vunpack.c.l.b16 %v616
        %v696 = vunpack.c.l.b16 %v617
        %v697 = vunpack.c.l.b16 %v618
        %v698 = vunpack.c.l.b16 %v619
        %v699 = vunpack.c.l.b16 %v620
        %v700 = vunpack.c.l.b16 %v621
        %v701 = vunpack.c.l.b16 %v622
        %v702 = vunpack.c.l.b16 %v623
        %v703 = vunpack.c.l.b16 %v624
        %v704 = vpack.c.b16 %v669, %v668
        %v705 = vpack.c.b16 %v671, %v670
        %v706 = vpack.c.b16 %v673, %v672
        %v707 = vpack.c.b16 %v675, %v674
        %v708 = vpack.c.b16 %v677, %v676
        %v709 = vpack.c.b16 %v679, %v678
        %v710 = vpack.c.b16 %v681, %v680
        %v711 = vpack.c.b16 %v683, %v682
        %v712 = vpack.c.b16 %v685, %v684
        %v713 = vpack.c.b16 %v687, %v686
        %v714 = vpack.c.b16 %v689, %v688
        %v715 = vpack.c.b16 %v691, %v690
        %v716 = vpack.c.b16 %v693, %v692
        %v717 = vpack.c.b16 %v695, %v694
        %v718 = vpack.c.b16 %v697, %v696
        %v719 = vpack.c.b16 %v699, %v698
        %v720 = vpack.c.b16 %v701, %v700
        %v721 = vpack.c.b16 %v703, %v702
        %v741 = vsel %vm239, %v576, 0
        %v744 = vsel %vm239, %v579, 0
        %v747 = vsel %vm239, %v582, 0
        %v750 = vsel %vm239, %v585, 0
        %v753 = vsel %vm239, %v588, 0
        %755 = vmatprep.subr.bf16.mxu0 0
        %756 = vmatpush1.bf16.msra.mxu0 %v704
        %757 = vmatprep.subr.bf16.mxu0 0
        %758 = vmatpush1.bf16.msra.mxu0 %v705
        %759 = vmatprep.subr.bf16.mxu0 0
        %760 = vmatpush1.bf16.msra.mxu0 %v706
        %761 = vmatprep.subr.bf16.mxu0 0
        %762 = vmatpush1.bf16.msra.mxu0 %v707
        %763 = vmatprep.subr.bf16.mxu0 0
        %764 = vmatpush1.bf16.msra.mxu0 %v708
        %765 = vmatprep.subr.bf16.mxu0 0
        %766 = vmatpush1.bf16.msra.mxu0 %v709
        %767 = vmatprep.subr.bf16.mxu0 0
        %768 = vmatpush1.bf16.msra.mxu0 %v710
        %769 = vmatprep.subr.bf16.mxu0 0
        %770 = vmatpush1.bf16.msra.mxu0 %v711
        %771 = vmatprep.subr.bf16.mxu0 0
        %772 = vmatpush1.bf16.msra.mxu0 %v712
        %773 = vmatprep.subr.bf16.mxu0 0
        %774 = vmatpush1.bf16.msra.mxu0 %v713
        %775 = vmatprep.subr.bf16.mxu0 0
        %776 = vmatpush1.bf16.msra.mxu0 %v714
        %777 = vmatprep.subr.bf16.mxu0 0
        %778 = vmatpush1.bf16.msra.mxu0 %v715
        %779 = vmatprep.subr.bf16.mxu0 0
        %780 = vmatpush1.bf16.msra.mxu0 %v716
        %781 = vmatprep.subr.bf16.mxu0 0
        %782 = vmatpush1.bf16.msra.mxu0 %v717
        %783 = vmatprep.subr.bf16.mxu0 0
        %784 = vmatpush1.bf16.msra.mxu0 %v718
        %785 = vmatprep.subr.bf16.mxu0 0
        %786 = vmatpush1.bf16.msra.mxu0 %v719
        %787 = vmatprep.mubr.bf16.mxu0 %v575
        %788 = vmatmul.mubr.bf16.gmra.mrb[0].mxu0 %v574
        %v789 = vpop.f32.mrb[0].mxu0
        %v790 = vadd.f32 %v630, %v789
        %v791 = vpop.f32.mrb[0].mxu0
        %v792 = vpop.f32.mrb[0].mxu0
        %v793 = vadd.f32 %v630, %v792
        %v794 = vpop.f32.mrb[0].mxu0
        %795 = vmatprep.mubr.bf16.mxu0 %v578
        %796 = vmatmul.mubr.bf16.gmra.mrb[0].mxu0 %v577
        %v797 = vpop.f32.mrb[0].mxu0
        %v798 = vadd.f32 %v630, %v797
        %v799 = vpop.f32.mrb[0].mxu0
        %v800 = vpop.f32.mrb[0].mxu0
        %v801 = vadd.f32 %v630, %v800
        %v802 = vpop.f32.mrb[0].mxu0
        %803 = vmatprep.mubr.bf16.mxu0 %v581
        %804 = vmatmul.mubr.bf16.gmra.mrb[0].mxu0 %v580
        %v805 = vpop.f32.mrb[0].mxu0
        %v806 = vadd.f32 %v630, %v805
        %v807 = vpop.f32.mrb[0].mxu0
        %v808 = vpop.f32.mrb[0].mxu0
        %v809 = vadd.f32 %v630, %v808
        %v810 = vpop.f32.mrb[0].mxu0
        %811 = vmatprep.mubr.bf16.mxu0 %v584
        %812 = vmatmul.mubr.bf16.gmra.mrb[0].mxu0 %v583
        %v813 = vpop.f32.mrb[0].mxu0
        %v814 = vadd.f32 %v630, %v813
        %v815 = vpop.f32.mrb[0].mxu0
        %v816 = vpop.f32.mrb[0].mxu0
        %v817 = vadd.f32 %v630, %v816
        %v818 = vpop.f32.mrb[0].mxu0
        %819 = vmatprep.mubr.bf16.mxu0 %v587
        %820 = vmatmul.mubr.bf16.gmra.mrb[0].mxu0 %v586
        %v821 = vpop.f32.mrb[0].mxu0
        %v822 = vadd.f32 %v630, %v821
        %v823 = vpop.f32.mrb[0].mxu0
        %v824 = vpop.f32.mrb[0].mxu0
        %v825 = vadd.f32 %v630, %v824
        %v826 = vpop.f32.mrb[0].mxu0
        %827 = vdwg.mxu0
        %828 = vmatprep.subr.bf16.mxu0 0
        %829 = vmatpush1.bf16.msra.mxu0 %v720
        %830 = vmatprep.subr.bf16.mxu0 0
        %831 = vmatpush1.bf16.msra.mxu0 %v721
        %832 = vmatprep.subr.bf16.mxu0 0
        %833 = vmatpush1.bf16.msra.mxu0 0
        %834 = vmatprep.subr.bf16.mxu0 0
        %835 = vmatpush1.bf16.msra.mxu0 0
        %836 = vmatprep.subr.bf16.mxu0 0
        %837 = vmatpush1.bf16.msra.mxu0 0
        %838 = vmatprep.subr.bf16.mxu0 0
        %839 = vmatpush1.bf16.msra.mxu0 0
        %840 = vmatprep.subr.bf16.mxu0 0
        %841 = vmatpush1.bf16.msra.mxu0 0
        %842 = vmatprep.subr.bf16.mxu0 0
        %843 = vmatpush1.bf16.msra.mxu0 0
        %844 = vmatprep.subr.bf16.mxu0 0
        %845 = vmatpush1.bf16.msra.mxu0 0
        %846 = vmatprep.subr.bf16.mxu0 0
        %847 = vmatpush1.bf16.msra.mxu0 0
        %848 = vmatprep.subr.bf16.mxu0 0
        %849 = vmatpush1.bf16.msra.mxu0 0
        %850 = vmatprep.subr.bf16.mxu0 0
        %851 = vmatpush1.bf16.msra.mxu0 0
        %852 = vmatprep.subr.bf16.mxu0 0
        %853 = vmatpush1.bf16.msra.mxu0 0
        %854 = vmatprep.subr.bf16.mxu0 0
        %855 = vmatpush1.bf16.msra.mxu0 0
        %856 = vmatprep.subr.bf16.mxu0 0
        %857 = vmatpush1.bf16.msra.mxu0 0
        %858 = vmatprep.subr.bf16.mxu0 0
        %859 = vmatpush1.bf16.msra.mxu0 0
        %860 = vmatprep.mubr.bf16.mxu0 0
        %861 = vmatmul.mubr.bf16.gmra.mrb[0].mxu0 %v741
        %v862 = vpop.f32.mrb[0].mxu0
        %v863 = vadd.f32 %v790, %v862
        %v864 = vpop.f32.mrb[0].mxu0
        %v865 = vpop.f32.mrb[0].mxu0
        %v866 = vadd.f32 %v793, %v865
        %v867 = vpop.f32.mrb[0].mxu0
        %868 = vmatprep.mubr.bf16.mxu0 0
        %869 = vmatmul.mubr.bf16.gmra.mrb[0].mxu0 %v744
        %v870 = vpop.f32.mrb[0].mxu0
        %v871 = vadd.f32 %v798, %v870
        %v872 = vpop.f32.mrb[0].mxu0
        %v873 = vpop.f32.mrb[0].mxu0
        %v874 = vadd.f32 %v801, %v873
        %v875 = vpop.f32.mrb[0].mxu0
        %876 = vmatprep.mubr.bf16.mxu0 0
        %877 = vmatmul.mubr.bf16.gmra.mrb[0].mxu0 %v747
        %v878 = vpop.f32.mrb[0].mxu0
        %v879 = vadd.f32 %v806, %v878
        %v880 = vpop.f32.mrb[0].mxu0
        %v881 = vpop.f32.mrb[0].mxu0
        %v882 = vadd.f32 %v809, %v881
        %v883 = vpop.f32.mrb[0].mxu0
        %884 = vmatprep.mubr.bf16.mxu0 0
        %885 = vmatmul.mubr.bf16.gmra.mrb[0].mxu0 %v750
        %v886 = vpop.f32.mrb[0].mxu0
        %v887 = vadd.f32 %v814, %v886
        %v888 = vpop.f32.mrb[0].mxu0
        %v889 = vpop.f32.mrb[0].mxu0
        %v890 = vadd.f32 %v817, %v889
        %v891 = vpop.f32.mrb[0].mxu0
        %892 = vmatprep.mubr.bf16.mxu0 0
        %893 = vmatmul.mubr.bf16.gmra.mrb[0].mxu0 %v753
        %v894 = vpop.f32.mrb[0].mxu0
        %v895 = vadd.f32 %v822, %v894
        %v896 = vpop.f32.mrb[0].mxu0
        %v897 = vpop.f32.mrb[0].mxu0
        %v898 = vadd.f32 %v825, %v897
        %v899 = vpop.f32.mrb[0].mxu0
        %900 = vdwg.mxu0
        %v901 = vmax.f32 %v863, 0.0
        %v902 = vmax.f32 %v866, 0.0
        %v903 = vmax.f32 %v871, 0.0
        %v904 = vmax.f32 %v874, 0.0
        %v905 = vmax.f32 %v879, 0.0
        %v906 = vmax.f32 %v882, 0.0
        %v907 = vmax.f32 %v887, 0.0
        %v908 = vmax.f32 %v890, 0.0
        %v909 = vmax.f32 %v895, 0.0
        %v910 = vmax.f32 %v898, 0.0
        %vm911 = vcmask 523264
        %912 = vst.msk [vmem:[#allocation3] sm:$0xff] %vm911, 0.0
        %vm913 = vcmask 518144
        %914 = vst.msk [vmem:[#allocation3 + $0x8] sm:$0x7] %vm913, 0.0
        %vm915 = vcmask 517120
        %916 = vst.msk [vmem:[#allocation3 + $0x13] sm:$0x3] %vm915, 0.0
        %917 = vst.msk [vmem:[#allocation3 + $0x1d] sm:$0x3] %vm915, 0.0
        %918 = vst.msk [vmem:[#allocation3 + $0x27] sm:$0x3] %vm915, 0.0
        %919 = vst.msk [vmem:[#allocation3 + $0x31] sm:$0x3] %vm915, 0.0
        %920 = vst.msk [vmem:[#allocation3 + $0x3b] sm:$0x3] %vm915, 0.0
        %921 = vst.msk [vmem:[#allocation3 + $0x45] sm:$0x3] %vm915, 0.0
        %922 = vst.msk [vmem:[#allocation3 + $0x4f] sm:$0x3] %vm915, 0.0
        %923 = vst.msk [vmem:[#allocation3 + $0x59] sm:$0xff] %vm911, 0.0
        %924 = vst.msk [vmem:[#allocation3 + $0x61] sm:$0xff] %vm911, 0.0
        %vm925 = vcmask 520192
        %926 = vst.msk [vmem:[#allocation3 + $0x69] sm:$0x1f] %vm925, 0.0
        %927 = vst.msk [vmem:[#allocation3 + $0xb] sm:$0xff] %vm911, %v901
        %vm928 = vcmask 523266
        %929 = vst.msk [vmem:[#allocation3 + $0x13] sm:$0xfc] %vm928, %v902
        %930 = vst.msk [vmem:[#allocation3 + $0x1b] sm:$0x3] %vm915, %v903
        %vm931 = vcmask 523268
        %932 = vst.msk [vmem:[#allocation3 + $0x1b] sm:$0xf0] %vm931, %v903
        %vm933 = vcmask 519168
        %934 = vst.msk [vmem:[#allocation3 + $0x23] sm:$0xf] %vm933, %v904
        %vm935 = vcmask 523270
        %936 = vst.msk [vmem:[#allocation3 + $0x23] sm:$0xc0] %vm935, %v904
        %vm937 = vcmask 521216
        %938 = vst.msk [vmem:[#allocation3 + $0x2b] sm:$0x3f] %vm937, %v905
        %939 = vst.msk [vmem:[#allocation3 + $0x33] sm:$0xff] %vm911, %v906
        %940 = vst.msk [vmem:[#allocation3 + $0x3b] sm:$0xfc] %vm928, %v907
        %941 = vst.msk [vmem:[#allocation3 + $0x43] sm:$0x3] %vm915, %v908
        %942 = vst.msk [vmem:[#allocation3 + $0x43] sm:$0xf0] %vm931, %v908
        %943 = vst.msk [vmem:[#allocation3 + $0x4b] sm:$0xf] %vm933, %v909
        %944 = vst.msk [vmem:[#allocation3 + $0x4b] sm:$0xc0] %vm935, %v909
        %945 = vst.msk [vmem:[#allocation3 + $0x53] sm:$0x3f] %vm937, %v910
        %v946 = vld [vmem:[#allocation3] sm:$0xff]
        %v947 = vld [vmem:[#allocation3 + $0x8] sm:$0xff]
        %v948 = vld [vmem:[#allocation3 + $0x10] sm:$0xff]
        %v949 = vld [vmem:[#allocation3 + $0x18] sm:$0xff]
        %v950 = vld [vmem:[#allocation3 + $0x20] sm:$0xff]
        %v951 = vld [vmem:[#allocation3 + $0x28] sm:$0xff]
        %v952 = vld [vmem:[#allocation3 + $0x30] sm:$0xff]
        %v953 = vld [vmem:[#allocation3 + $0x38] sm:$0xff]
        %v954 = vld [vmem:[#allocation3 + $0x40] sm:$0xff]
        %v955 = vld [vmem:[#allocation3 + $0x48] sm:$0xff]
        %v956 = vpack.c.bf16 %v947, %v946
        %v957 = vpack.c.bf16 %v949, %v948
        %v958 = vpack.c.bf16 %v951, %v950
        %v959 = vpack.c.bf16 %v953, %v952
        %v960 = vpack.c.bf16 %v955, %v954
        %961 = vst.msk [vmem:[#allocation5] sm:$0xff] %vm911, %v956
        %962 = vst.msk [vmem:[#allocation5 + $0x28] sm:$0xff] %vm911, %v957
        %963 = vst.msk [vmem:[#allocation5 + $0x50] sm:$0xff] %vm911, %v958
        %964 = vst.msk [vmem:[#allocation5 + $0x78] sm:$0xff] %vm911, %v959
        %965 = vst.msk [vmem:[#allocation5 + $0xa0] sm:$0xff] %vm911, %v960
        %v966 = vld [vmem:[#allocation3 + $0x1] sm:$0xff]
        %v967 = vld [vmem:[#allocation3 + $0x9] sm:$0xff]
        %v968 = vld [vmem:[#allocation3 + $0x11] sm:$0xff]
        %v969 = vld [vmem:[#allocation3 + $0x19] sm:$0xff]
        %v970 = vld [vmem:[#allocation3 + $0x21] sm:$0xff]
        %v971 = vld [vmem:[#allocation3 + $0x29] sm:$0xff]
        %v972 = vld [vmem:[#allocation3 + $0x31] sm:$0xff]
        %v973 = vld [vmem:[#allocation3 + $0x39] sm:$0xff]
        %v974 = vld [vmem:[#allocation3 + $0x41] sm:$0xff]
        %v975 = vld [vmem:[#allocation3 + $0x49] sm:$0xff]
        %v976 = vpack.c.bf16 %v967, %v966
        %v977 = vpack.c.bf16 %v969, %v968
        %v978 = vpack.c.bf16 %v971, %v970
        %v979 = vpack.c.bf16 %v973, %v972
        %v980 = vpack.c.bf16 %v975, %v974
        %986 = vrot.lane.b32.xlu0 %v976, 64
        %v987 = vpop.permute.xlu0 %986
        %988 = vrot.lane.b32.xlu0 %v977, 64
        %v989 = vpop.permute.xlu0 %988
        %990 = vrot.lane.b32.xlu0 %v978, 64
        %v991 = vpop.permute.xlu0 %990
        %992 = vrot.lane.b32.xlu0 %v979, 64
        %v993 = vpop.permute.xlu0 %992
        %994 = vrot.lane.b32.xlu0 %v980, 64
        %v995 = vpop.permute.xlu0 %994
        %vm1001 = vcmask 1048064
        %1002 = vst.msk [vmem:[#allocation5] sm:$0xff] %vm1001, %v987
        %1003 = vst.msk [vmem:[#allocation5 + $0x28] sm:$0xff] %vm1001, %v989
        %1004 = vst.msk [vmem:[#allocation5 + $0x50] sm:$0xff] %vm1001, %v991
        %1005 = vst.msk [vmem:[#allocation5 + $0x78] sm:$0xff] %vm1001, %v993
        %1006 = vst.msk [vmem:[#allocation5 + $0xa0] sm:$0xff] %vm1001, %v995
        %v1007 = vld [vmem:[#allocation3 + $0x2] sm:$0xff]
        %v1008 = vld [vmem:[#allocation3 + $0xa] sm:$0xff]
        %v1009 = vld [vmem:[#allocation3 + $0x12] sm:$0xff]
        %v1010 = vld [vmem:[#allocation3 + $0x1a] sm:$0xff]
        %v1011 = vld [vmem:[#allocation3 + $0x22] sm:$0xff]
        %v1012 = vld [vmem:[#allocation3 + $0x2a] sm:$0xff]
        %v1013 = vld [vmem:[#allocation3 + $0x32] sm:$0xff]
        %v1014 = vld [vmem:[#allocation3 + $0x3a] sm:$0xff]
        %v1015 = vld [vmem:[#allocation3 + $0x42] sm:$0xff]
        %v1016 = vld [vmem:[#allocation3 + $0x4a] sm:$0xff]
        %v1017 = vpack.c.bf16 %v1008, %v1007
        %v1018 = vpack.c.bf16 %v1010, %v1009
        %v1019 = vpack.c.bf16 %v1012, %v1011
        %v1020 = vpack.c.bf16 %v1014, %v1013
        %v1021 = vpack.c.bf16 %v1016, %v1015
        %1022 = vst.msk [vmem:[#allocation5 + $0x8] sm:$0xff] %vm911, %v1017
        %1023 = vst.msk [vmem:[#allocation5 + $0x30] sm:$0xff] %vm911, %v1018
        %1024 = vst.msk [vmem:[#allocation5 + $0x58] sm:$0xff] %vm911, %v1019
        %1025 = vst.msk [vmem:[#allocation5 + $0x80] sm:$0xff] %vm911, %v1020
        %1026 = vst.msk [vmem:[#allocation5 + $0xa8] sm:$0xff] %vm911, %v1021
        %v1027 = vld [vmem:[#allocation3 + $0xa] sm:$0xff]
        %v1028 = vld [vmem:[#allocation3 + $0x12] sm:$0xff]
        %v1029 = vld [vmem:[#allocation3 + $0x1a] sm:$0xff]
        %v1030 = vld [vmem:[#allocation3 + $0x22] sm:$0xff]
        %v1031 = vld [vmem:[#allocation3 + $0x2a] sm:$0xff]
        %v1032 = vld [vmem:[#allocation3 + $0x32] sm:$0xff]
        %v1033 = vld [vmem:[#allocation3 + $0x3a] sm:$0xff]
        %v1034 = vld [vmem:[#allocation3 + $0x42] sm:$0xff]
        %v1035 = vld [vmem:[#allocation3 + $0x4a] sm:$0xff]
        %v1036 = vld [vmem:[#allocation3 + $0x52] sm:$0xff]
        %v1037 = vpack.c.bf16 %v1028, %v1027
        %v1038 = vpack.c.bf16 %v1030, %v1029
        %v1039 = vpack.c.bf16 %v1032, %v1031
        %v1040 = vpack.c.bf16 %v1034, %v1033
        %v1041 = vpack.c.bf16 %v1036, %v1035
        %1047 = vrot.lane.b32.xlu0 %v1037, 64
        %v1048 = vpop.permute.xlu0 %1047
        %1049 = vrot.lane.b32.xlu0 %v1038, 64
        %v1050 = vpop.permute.xlu0 %1049
        %1051 = vrot.lane.b32.xlu0 %v1039, 64
        %v1052 = vpop.permute.xlu0 %1051
        %1053 = vrot.lane.b32.xlu0 %v1040, 64
        %v1054 = vpop.permute.xlu0 %1053
        %1055 = vrot.lane.b32.xlu0 %v1041, 64
        %v1056 = vpop.permute.xlu0 %1055
        %1062 = vst.msk [vmem:[#allocation5 + $0x8] sm:$0xff] %vm1001, %v1048
        %1063 = vst.msk [vmem:[#allocation5 + $0x30] sm:$0xff] %vm1001, %v1050
        %1064 = vst.msk [vmem:[#allocation5 + $0x58] sm:$0xff] %vm1001, %v1052
        %1065 = vst.msk [vmem:[#allocation5 + $0x80] sm:$0xff] %vm1001, %v1054
        %1066 = vst.msk [vmem:[#allocation5 + $0xa8] sm:$0xff] %vm1001, %v1056
        %v1067 = vld [vmem:[#allocation3 + $0xb] sm:$0xff]
        %v1068 = vld [vmem:[#allocation3 + $0x13] sm:$0xff]
        %v1069 = vld [vmem:[#allocation3 + $0x1b] sm:$0xff]
        %v1070 = vld [vmem:[#allocation3 + $0x23] sm:$0xff]
        %v1071 = vld [vmem:[#allocation3 + $0x2b] sm:$0xff]
        %v1072 = vld [vmem:[#allocation3 + $0x33] sm:$0xff]
        %v1073 = vld [vmem:[#allocation3 + $0x3b] sm:$0xff]
        %v1074 = vld [vmem:[#allocation3 + $0x43] sm:$0xff]
        %v1075 = vld [vmem:[#allocation3 + $0x4b] sm:$0xff]
        %v1076 = vld [vmem:[#allocation3 + $0x53] sm:$0xff]
        %v1077 = vpack.c.bf16 %v1068, %v1067
        %v1078 = vpack.c.bf16 %v1070, %v1069
        %v1079 = vpack.c.bf16 %v1072, %v1071
        %v1080 = vpack.c.bf16 %v1074, %v1073
        %v1081 = vpack.c.bf16 %v1076, %v1075
        %1082 = vst.msk [vmem:[#allocation5 + $0x10] sm:$0xff] %vm911, %v1077
        %1083 = vst.msk [vmem:[#allocation5 + $0x38] sm:$0xff] %vm911, %v1078
        %1084 = vst.msk [vmem:[#allocation5 + $0x60] sm:$0xff] %vm911, %v1079
        %1085 = vst.msk [vmem:[#allocation5 + $0x88] sm:$0xff] %vm911, %v1080
        %1086 = vst.msk [vmem:[#allocation5 + $0xb0] sm:$0xff] %vm911, %v1081
        %v1087 = vld [vmem:[#allocation3 + $0xc] sm:$0xff]
        %v1088 = vld [vmem:[#allocation3 + $0x14] sm:$0xff]
        %v1089 = vld [vmem:[#allocation3 + $0x1c] sm:$0xff]
        %v1090 = vld [vmem:[#allocation3 + $0x24] sm:$0xff]
        %v1091 = vld [vmem:[#allocation3 + $0x2c] sm:$0xff]
        %v1092 = vld [vmem:[#allocation3 + $0x34] sm:$0xff]
        %v1093 = vld [vmem:[#allocation3 + $0x3c] sm:$0xff]
        %v1094 = vld [vmem:[#allocation3 + $0x44] sm:$0xff]
        %v1095 = vld [vmem:[#allocation3 + $0x4c] sm:$0xff]
        %v1096 = vld [vmem:[#allocation3 + $0x54] sm:$0xff]
        %v1097 = vpack.c.bf16 %v1088, %v1087
        %v1098 = vpack.c.bf16 %v1090, %v1089
        %v1099 = vpack.c.bf16 %v1092, %v1091
        %v1100 = vpack.c.bf16 %v1094, %v1093
        %v1101 = vpack.c.bf16 %v1096, %v1095
        %1107 = vrot.lane.b32.xlu0 %v1097, 64
        %v1108 = vpop.permute.xlu0 %1107
        %1109 = vrot.lane.b32.xlu0 %v1098, 64
        %v1110 = vpop.permute.xlu0 %1109
        %1111 = vrot.lane.b32.xlu0 %v1099, 64
        %v1112 = vpop.permute.xlu0 %1111
        %1113 = vrot.lane.b32.xlu0 %v1100, 64
        %v1114 = vpop.permute.xlu0 %1113
        %1115 = vrot.lane.b32.xlu0 %v1101, 64
        %v1116 = vpop.permute.xlu0 %1115
        %1122 = vst.msk [vmem:[#allocation5 + $0x10] sm:$0xff] %vm1001, %v1108
        %1123 = vst.msk [vmem:[#allocation5 + $0x38] sm:$0xff] %vm1001, %v1110
        %1124 = vst.msk [vmem:[#allocation5 + $0x60] sm:$0xff] %vm1001, %v1112
        %1125 = vst.msk [vmem:[#allocation5 + $0x88] sm:$0xff] %vm1001, %v1114
        %1126 = vst.msk [vmem:[#allocation5 + $0xb0] sm:$0xff] %vm1001, %v1116
        %v1127 = vld [vmem:[#allocation3 + $0x14] sm:$0xff]
        %v1128 = vld [vmem:[#allocation3 + $0x1c] sm:$0xff]
        %v1129 = vld [vmem:[#allocation3 + $0x24] sm:$0xff]
        %v1130 = vld [vmem:[#allocation3 + $0x2c] sm:$0xff]
        %v1131 = vld [vmem:[#allocation3 + $0x34] sm:$0xff]
        %v1132 = vld [vmem:[#allocation3 + $0x3c] sm:$0xff]
        %v1133 = vld [vmem:[#allocation3 + $0x44] sm:$0xff]
        %v1134 = vld [vmem:[#allocation3 + $0x4c] sm:$0xff]
        %v1135 = vld [vmem:[#allocation3 + $0x54] sm:$0xff]
        %v1136 = vld [vmem:[#allocation3 + $0x5c] sm:$0xff]
        %v1137 = vpack.c.bf16 %v1128, %v1127
        %v1138 = vpack.c.bf16 %v1130, %v1129
        %v1139 = vpack.c.bf16 %v1132, %v1131
        %v1140 = vpack.c.bf16 %v1134, %v1133
        %v1141 = vpack.c.bf16 %v1136, %v1135
        %1142 = vst.msk [vmem:[#allocation5 + $0x18] sm:$0xff] %vm911, %v1137
        %1143 = vst.msk [vmem:[#allocation5 + $0x40] sm:$0xff] %vm911, %v1138
        %1144 = vst.msk [vmem:[#allocation5 + $0x68] sm:$0xff] %vm911, %v1139
        %1145 = vst.msk [vmem:[#allocation5 + $0x90] sm:$0xff] %vm911, %v1140
        %1146 = vst.msk [vmem:[#allocation5 + $0xb8] sm:$0xff] %vm911, %v1141
        %v1147 = vld [vmem:[#allocation3 + $0x15] sm:$0xff]
        %v1148 = vld [vmem:[#allocation3 + $0x1d] sm:$0xff]
        %v1149 = vld [vmem:[#allocation3 + $0x25] sm:$0xff]
        %v1150 = vld [vmem:[#allocation3 + $0x2d] sm:$0xff]
        %v1151 = vld [vmem:[#allocation3 + $0x35] sm:$0xff]
        %v1152 = vld [vmem:[#allocation3 + $0x3d] sm:$0xff]
        %v1153 = vld [vmem:[#allocation3 + $0x45] sm:$0xff]
        %v1154 = vld [vmem:[#allocation3 + $0x4d] sm:$0xff]
        %v1155 = vld [vmem:[#allocation3 + $0x55] sm:$0xff]
        %v1156 = vld [vmem:[#allocation3 + $0x5d] sm:$0xff]
        %v1157 = vpack.c.bf16 %v1148, %v1147
        %v1158 = vpack.c.bf16 %v1150, %v1149
        %v1159 = vpack.c.bf16 %v1152, %v1151
        %v1160 = vpack.c.bf16 %v1154, %v1153
        %v1161 = vpack.c.bf16 %v1156, %v1155
        %1167 = vrot.lane.b32.xlu0 %v1157, 64
        %v1168 = vpop.permute.xlu0 %1167
        %1169 = vrot.lane.b32.xlu0 %v1158, 64
        %v1170 = vpop.permute.xlu0 %1169
        %1171 = vrot.lane.b32.xlu0 %v1159, 64
        %v1172 = vpop.permute.xlu0 %1171
        %1173 = vrot.lane.b32.xlu0 %v1160, 64
        %v1174 = vpop.permute.xlu0 %1173
        %1175 = vrot.lane.b32.xlu0 %v1161, 64
        %v1176 = vpop.permute.xlu0 %1175
        %1182 = vst.msk [vmem:[#allocation5 + $0x18] sm:$0xff] %vm1001, %v1168
        %1183 = vst.msk [vmem:[#allocation5 + $0x40] sm:$0xff] %vm1001, %v1170
        %1184 = vst.msk [vmem:[#allocation5 + $0x68] sm:$0xff] %vm1001, %v1172
        %1185 = vst.msk [vmem:[#allocation5 + $0x90] sm:$0xff] %vm1001, %v1174
        %1186 = vst.msk [vmem:[#allocation5 + $0xb8] sm:$0xff] %vm1001, %v1176
        %v1187 = vld [vmem:[#allocation3 + $0x16] sm:$0xff]
        %v1188 = vld [vmem:[#allocation3 + $0x1e] sm:$0xff]
        %v1189 = vld [vmem:[#allocation3 + $0x26] sm:$0xff]
        %v1190 = vld [vmem:[#allocation3 + $0x2e] sm:$0xff]
        %v1191 = vld [vmem:[#allocation3 + $0x36] sm:$0xff]
        %v1192 = vld [vmem:[#allocation3 + $0x3e] sm:$0xff]
        %v1193 = vld [vmem:[#allocation3 + $0x46] sm:$0xff]
        %v1194 = vld [vmem:[#allocation3 + $0x4e] sm:$0xff]
        %v1195 = vld [vmem:[#allocation3 + $0x56] sm:$0xff]
        %v1196 = vld [vmem:[#allocation3 + $0x5e] sm:$0xff]
        %v1197 = vpack.c.bf16 %v1188, %v1187
        %v1198 = vpack.c.bf16 %v1190, %v1189
        %v1199 = vpack.c.bf16 %v1192, %v1191
        %v1200 = vpack.c.bf16 %v1194, %v1193
        %v1201 = vpack.c.bf16 %v1196, %v1195
        %1202 = vst.msk [vmem:[#allocation5 + $0x20] sm:$0xff] %vm911, %v1197
        %1203 = vst.msk [vmem:[#allocation5 + $0x48] sm:$0xff] %vm911, %v1198
        %1204 = vst.msk [vmem:[#allocation5 + $0x70] sm:$0xff] %vm911, %v1199
        %1205 = vst.msk [vmem:[#allocation5 + $0x98] sm:$0xff] %vm911, %v1200
        %1206 = vst.msk [vmem:[#allocation5 + $0xc0] sm:$0xff] %vm911, %v1201
        %v1207 = vld [vmem:[#allocation5] sm:$0xff]
        %v1208 = vld [vmem:[#allocation5 + $0x8] sm:$0xff]
        %v1209 = vld [vmem:[#allocation5 + $0x10] sm:$0xff]
        %v1210 = vld [vmem:[#allocation5 + $0x18] sm:$0xff]
        %v1211 = vld [vmem:[#allocation5 + $0x20] sm:$0xff]
        %v1212 = vld [vmem:[#allocation5 + $0x28] sm:$0xff]
        %v1213 = vld [vmem:[#allocation5 + $0x30] sm:$0xff]
        %v1214 = vld [vmem:[#allocation5 + $0x38] sm:$0xff]
        %v1215 = vld [vmem:[#allocation5 + $0x40] sm:$0xff]
        %v1216 = vld [vmem:[#allocation5 + $0x48] sm:$0xff]
        %v1217 = vld [vmem:[#allocation5 + $0x50] sm:$0xff]
        %v1218 = vld [vmem:[#allocation5 + $0x58] sm:$0xff]
        %v1219 = vld [vmem:[#allocation5 + $0x60] sm:$0xff]
        %v1220 = vld [vmem:[#allocation5 + $0x68] sm:$0xff]
        %v1221 = vld [vmem:[#allocation5 + $0x70] sm:$0xff]
        %v1222 = vld [vmem:[#allocation5 + $0x78] sm:$0xff]
        %v1223 = vld [vmem:[#allocation5 + $0x80] sm:$0xff]
        %v1224 = vld [vmem:[#allocation5 + $0x88] sm:$0xff]
        %v1225 = vld [vmem:[#allocation5 + $0x90] sm:$0xff]
        %v1226 = vld [vmem:[#allocation5 + $0x98] sm:$0xff]
        %v1227 = vld [vmem:[#allocation5 + $0xa0] sm:$0xff]
        %v1228 = vld [vmem:[#allocation5 + $0xa8] sm:$0xff]
        %v1229 = vld [vmem:[#allocation5 + $0xb0] sm:$0xff]
        %v1230 = vld [vmem:[#allocation5 + $0xb8] sm:$0xff]
        %v1231 = vld [vmem:[#allocation5 + $0xc0] sm:$0xff]
        %v1232 = vld [vmem:[#allocation6] sm:$0xf]
        %v1233 = vld [vmem:[#allocation6 + $0x4] sm:$0xf]
        %v1234 = vld [vmem:[#allocation6 + $0x8] sm:$0xf]
        %v1235 = vld [vmem:[#allocation6 + $0xc] sm:$0xf]
        %v1236 = vld [vmem:[#allocation6 + $0x10] sm:$0xf]
        %v1237 = vld [vmem:[#allocation6 + $0x14] sm:$0xf]
        %v1238 = vld [vmem:[#allocation6 + $0x18] sm:$0xf]
        %v1239 = vld [vmem:[#allocation6 + $0x1c] sm:$0xf]
        %v1240 = vld [vmem:[#allocation6 + $0x20] sm:$0xf]
        %v1241 = vld [vmem:[#allocation6 + $0x24] sm:$0xf]
        %v1242 = vld [vmem:[#allocation6 + $0x28] sm:$0xf]
        %v1243 = vld [vmem:[#allocation6 + $0x2c] sm:$0xf]
        %v1244 = vld [vmem:[#allocation6 + $0x30] sm:$0xf]
        %v1245 = vld [vmem:[#allocation6 + $0x34] sm:$0xf]
        %v1246 = vld [vmem:[#allocation6 + $0x38] sm:$0xf]
        %v1247 = vld [vmem:[#allocation6 + $0x3c] sm:$0xf]
        %v1248 = vld [vmem:[#allocation6 + $0x40] sm:$0xf]
        %v1249 = vld [vmem:[#allocation6 + $0x44] sm:$0xf]
        %v1250 = vld [vmem:[#allocation6 + $0x48] sm:$0xf]
        %v1251 = vld [vmem:[#allocation6 + $0x4c] sm:$0xf]
        %v1252 = vld [vmem:[#allocation6 + $0x50] sm:$0xf]
        %v1253 = vld [vmem:[#allocation6 + $0x54] sm:$0xf]
        %v1254 = vld [vmem:[#allocation6 + $0x58] sm:$0xf]
        %v1255 = vld [vmem:[#allocation6 + $0x5c] sm:$0xf]
        %v1256 = vld [vmem:[#allocation6 + $0x60] sm:$0xf]
        %v1257 = vld [vmem:[#allocation6 + $0x64] sm:$0xf]
        %v1258 = vld [vmem:[#allocation6 + $0x68] sm:$0xf]
        %v1259 = vld [vmem:[#allocation6 + $0x6c] sm:$0xf]
        %v1260 = vld [vmem:[#allocation6 + $0x70] sm:$0xf]
        %v1261 = vld [vmem:[#allocation6 + $0x74] sm:$0xf]
        %v1262 = vld [vmem:[#allocation6 + $0x78] sm:$0xf]
        %v1263 = vld [vmem:[#allocation6 + $0x7c] sm:$0xf]
        %v1264 = vld [vmem:[#allocation6 + $0x80] sm:$0xf]
        %v1265 = vld [vmem:[#allocation6 + $0x84] sm:$0xf]
        %v1266 = vld [vmem:[#allocation6 + $0x88] sm:$0xf]
        %v1267 = vld [vmem:[#allocation6 + $0x8c] sm:$0xf]
        %v1268 = vld [vmem:[#allocation6 + $0x90] sm:$0xf]
        %v1269 = vld [vmem:[#allocation6 + $0x94] sm:$0xf]
        %v1270 = vld [vmem:[#allocation6 + $0x98] sm:$0xf]
        %v1271 = vld [vmem:[#allocation6 + $0x9c] sm:$0xf]
        %v1272 = vld [vmem:[#allocation6 + $0xa0] sm:$0xf]
        %v1273 = vld [vmem:[#allocation6 + $0xa4] sm:$0xf]
        %v1274 = vld [vmem:[#allocation6 + $0xa8] sm:$0xf]
        %v1275 = vld [vmem:[#allocation6 + $0xac] sm:$0xf]
        %v1276 = vld [vmem:[#allocation6 + $0xb0] sm:$0xf]
        %v1277 = vld [vmem:[#allocation6 + $0xb4] sm:$0xf]
        %v1278 = vld [vmem:[#allocation6 + $0xb8] sm:$0xf]
        %v1279 = vld [vmem:[#allocation6 + $0xbc] sm:$0xf]
        %v1280 = vld [vmem:[#allocation6 + $0xc0] sm:$0xf]
        %v1281 = vld [vmem:[#allocation6 + $0xc4] sm:$0xf]
        %v1282 = vld [vmem:[#allocation6 + $0xc8] sm:$0xf]
        %v1283 = vld [vmem:[#allocation6 + $0xcc] sm:$0xf]
        %v1284 = vld [vmem:[#allocation6 + $0xd0] sm:$0xf]
        %v1285 = vld [vmem:[#allocation6 + $0xd4] sm:$0xf]
        %v1286 = vld [vmem:[#allocation6 + $0xd8] sm:$0xf]
        %v1287 = vld [vmem:[#allocation6 + $0xdc] sm:$0xf]
        %v1288 = vld [vmem:[#allocation6 + $0xe0] sm:$0xf]
        %v1289 = vld [vmem:[#allocation6 + $0xe4] sm:$0xf]
        %v1290 = vld [vmem:[#allocation6 + $0xe8] sm:$0xf]
        %v1291 = vld [vmem:[#allocation6 + $0xec] sm:$0xf]
        %v1292 = vld [vmem:[#allocation6 + $0xf0] sm:$0xf]
        %v1293 = vld [vmem:[#allocation6 + $0xf4] sm:$0xf]
        %v1294 = vld [vmem:[#allocation6 + $0xf8] sm:$0xf]
        %v1295 = vld [vmem:[#allocation6 + $0xfc] sm:$0xf]
        %v1296 = vld [vmem:[#allocation6 + $0x100] sm:$0xf]
        %v1297 = vld [vmem:[#allocation6 + $0x104] sm:$0xf]
        %v1298 = vld [vmem:[#allocation6 + $0x108] sm:$0xf]
        %v1299 = vld [vmem:[#allocation6 + $0x10c] sm:$0xf]
        %v1300 = vld [vmem:[#allocation6 + $0x110] sm:$0xf]
        %v1301 = vld [vmem:[#allocation6 + $0x114] sm:$0xf]
        %v1302 = vld [vmem:[#allocation6 + $0x118] sm:$0xf]
        %v1303 = vld [vmem:[#allocation6 + $0x11c] sm:$0xf]
        %v1304 = vld [vmem:[%s4] sm:$0x1]
        %v1306 = vlaneseq
        %v1307 = vshrl.u32 %v1306, 7
        %v1308 = vsub.s32 0, %v1307
        %v1309 = vrot.slane %v1304, %v1308
        %v1383 = vunpack.c.l.b16 %v1232
        %v1384 = vunpack.c.l.b16 %v1233
        %v1385 = vunpack.c.l.b16 %v1234
        %v1386 = vunpack.c.l.b16 %v1235
        %v1387 = vunpack.c.l.b16 %v1236
        %v1388 = vunpack.c.l.b16 %v1237
        %v1389 = vunpack.c.l.b16 %v1238
        %v1390 = vunpack.c.l.b16 %v1239
        %v1391 = vunpack.c.l.b16 %v1240
        %v1392 = vunpack.c.l.b16 %v1241
        %v1393 = vunpack.c.l.b16 %v1242
        %v1394 = vunpack.c.l.b16 %v1243
        %v1395 = vunpack.c.l.b16 %v1244
        %v1396 = vunpack.c.l.b16 %v1245
        %v1397 = vunpack.c.l.b16 %v1246
        %v1398 = vunpack.c.l.b16 %v1247
        %v1399 = vunpack.c.l.b16 %v1248
        %v1400 = vunpack.c.l.b16 %v1249
        %v1401 = vunpack.c.l.b16 %v1250
        %v1402 = vunpack.c.l.b16 %v1251
        %v1403 = vunpack.c.l.b16 %v1252
        %v1404 = vunpack.c.l.b16 %v1253
        %v1405 = vunpack.c.l.b16 %v1254
        %v1406 = vunpack.c.l.b16 %v1255
        %v1407 = vunpack.c.l.b16 %v1256
        %v1408 = vunpack.c.l.b16 %v1257
        %v1409 = vunpack.c.l.b16 %v1258
        %v1410 = vunpack.c.l.b16 %v1259
        %v1411 = vunpack.c.l.b16 %v1260
        %v1412 = vunpack.c.l.b16 %v1261
        %v1413 = vunpack.c.l.b16 %v1262
        %v1414 = vunpack.c.l.b16 %v1263
        %v1415 = vunpack.c.l.b16 %v1264
        %v1416 = vunpack.c.l.b16 %v1265
        %v1417 = vunpack.c.l.b16 %v1266
        %v1418 = vunpack.c.l.b16 %v1267
        %v1419 = vunpack.c.l.b16 %v1268
        %v1420 = vunpack.c.l.b16 %v1269
        %v1421 = vunpack.c.l.b16 %v1270
        %v1422 = vunpack.c.l.b16 %v1271
        %v1423 = vunpack.c.l.b16 %v1272
        %v1424 = vunpack.c.l.b16 %v1273
        %v1425 = vunpack.c.l.b16 %v1274
        %v1426 = vunpack.c.l.b16 %v1275
        %v1427 = vunpack.c.l.b16 %v1276
        %v1428 = vunpack.c.l.b16 %v1277
        %v1429 = vunpack.c.l.b16 %v1278
        %v1430 = vunpack.c.l.b16 %v1279
        %v1431 = vunpack.c.l.b16 %v1280
        %v1432 = vunpack.c.l.b16 %v1281
        %v1433 = vunpack.c.l.b16 %v1282
        %v1434 = vunpack.c.l.b16 %v1283
        %v1435 = vunpack.c.l.b16 %v1284
        %v1436 = vunpack.c.l.b16 %v1285
        %v1437 = vunpack.c.l.b16 %v1286
        %v1438 = vunpack.c.l.b16 %v1287
        %v1439 = vunpack.c.l.b16 %v1288
        %v1440 = vunpack.c.l.b16 %v1289
        %v1441 = vunpack.c.l.b16 %v1290
        %v1442 = vunpack.c.l.b16 %v1291
        %v1443 = vunpack.c.l.b16 %v1292
        %v1444 = vunpack.c.l.b16 %v1293
        %v1445 = vunpack.c.l.b16 %v1294
        %v1446 = vunpack.c.l.b16 %v1295
        %v1447 = vunpack.c.l.b16 %v1296
        %v1448 = vunpack.c.l.b16 %v1297
        %v1449 = vunpack.c.l.b16 %v1298
        %v1450 = vunpack.c.l.b16 %v1299
        %v1451 = vunpack.c.l.b16 %v1300
        %v1452 = vunpack.c.l.b16 %v1301
        %v1453 = vunpack.c.l.b16 %v1302
        %v1454 = vunpack.c.l.b16 %v1303
        %v1455 = vpack.c.b16 %v1384, %v1383
        %v1456 = vpack.c.b16 %v1386, %v1385
        %v1457 = vpack.c.b16 %v1388, %v1387
        %v1458 = vpack.c.b16 %v1390, %v1389
        %v1459 = vpack.c.b16 %v1392, %v1391
        %v1460 = vpack.c.b16 %v1394, %v1393
        %v1461 = vpack.c.b16 %v1396, %v1395
        %v1462 = vpack.c.b16 %v1398, %v1397
        %v1463 = vpack.c.b16 %v1400, %v1399
        %v1464 = vpack.c.b16 %v1402, %v1401
        %v1465 = vpack.c.b16 %v1404, %v1403
        %v1466 = vpack.c.b16 %v1406, %v1405
        %v1467 = vpack.c.b16 %v1408, %v1407
        %v1468 = vpack.c.b16 %v1410, %v1409
        %v1469 = vpack.c.b16 %v1412, %v1411
        %v1470 = vpack.c.b16 %v1414, %v1413
        %v1471 = vpack.c.b16 %v1416, %v1415
        %v1472 = vpack.c.b16 %v1418, %v1417
        %v1473 = vpack.c.b16 %v1420, %v1419
        %v1474 = vpack.c.b16 %v1422, %v1421
        %v1475 = vpack.c.b16 %v1424, %v1423
        %v1476 = vpack.c.b16 %v1426, %v1425
        %v1477 = vpack.c.b16 %v1428, %v1427
        %v1478 = vpack.c.b16 %v1430, %v1429
        %v1479 = vpack.c.b16 %v1432, %v1431
        %v1480 = vpack.c.b16 %v1434, %v1433
        %v1481 = vpack.c.b16 %v1436, %v1435
        %v1482 = vpack.c.b16 %v1438, %v1437
        %v1483 = vpack.c.b16 %v1440, %v1439
        %v1484 = vpack.c.b16 %v1442, %v1441
        %v1485 = vpack.c.b16 %v1444, %v1443
        %v1486 = vpack.c.b16 %v1446, %v1445
        %v1487 = vpack.c.b16 %v1448, %v1447
        %v1488 = vpack.c.b16 %v1450, %v1449
        %v1489 = vpack.c.b16 %v1452, %v1451
        %v1490 = vpack.c.b16 %v1454, %v1453
        %v1528 = vsel %vm911, %v1211, 0
        %v1531 = vsel %vm911, %v1216, 0
        %v1534 = vsel %vm911, %v1221, 0
        %v1537 = vsel %vm911, %v1226, 0
        %v1540 = vsel %vm911, %v1231, 0
        %1542 = vmatprep.subr.bf16.mxu0 0
        %1543 = vmatpush1.bf16.msra.mxu0 %v1455
        %1544 = vmatprep.subr.bf16.mxu0 0
        %1545 = vmatpush1.bf16.msra.mxu0 %v1456
        %1546 = vmatprep.subr.bf16.mxu0 0
        %1547 = vmatpush1.bf16.msra.mxu0 %v1457
        %1548 = vmatprep.subr.bf16.mxu0 0
        %1549 = vmatpush1.bf16.msra.mxu0 %v1458
        %1550 = vmatprep.subr.bf16.mxu0 0
        %1551 = vmatpush1.bf16.msra.mxu0 %v1459
        %1552 = vmatprep.subr.bf16.mxu0 0
        %1553 = vmatpush1.bf16.msra.mxu0 %v1460
        %1554 = vmatprep.subr.bf16.mxu0 0
        %1555 = vmatpush1.bf16.msra.mxu0 %v1461
        %1556 = vmatprep.subr.bf16.mxu0 0
        %1557 = vmatpush1.bf16.msra.mxu0 %v1462
        %1558 = vmatprep.subr.bf16.mxu0 0
        %1559 = vmatpush1.bf16.msra.mxu0 %v1463
        %1560 = vmatprep.subr.bf16.mxu0 0
        %1561 = vmatpush1.bf16.msra.mxu0 %v1464
        %1562 = vmatprep.subr.bf16.mxu0 0
        %1563 = vmatpush1.bf16.msra.mxu0 %v1465
        %1564 = vmatprep.subr.bf16.mxu0 0
        %1565 = vmatpush1.bf16.msra.mxu0 %v1466
        %1566 = vmatprep.subr.bf16.mxu0 0
        %1567 = vmatpush1.bf16.msra.mxu0 %v1467
        %1568 = vmatprep.subr.bf16.mxu0 0
        %1569 = vmatpush1.bf16.msra.mxu0 %v1468
        %1570 = vmatprep.subr.bf16.mxu0 0
        %1571 = vmatpush1.bf16.msra.mxu0 %v1469
        %1572 = vmatprep.subr.bf16.mxu0 0
        %1573 = vmatpush1.bf16.msra.mxu0 %v1470
        %1574 = vmatprep.mubr.bf16.mxu0 %v1208
        %1575 = vmatmul.mubr.bf16.gmra.mrb[0].mxu0 %v1207
        %v1576 = vpop.f32.mrb[0].mxu0
        %v1577 = vadd.f32 %v1309, %v1576
        %v1578 = vpop.f32.mrb[0].mxu0
        %v1579 = vpop.f32.mrb[0].mxu0
        %v1580 = vadd.f32 %v1309, %v1579
        %v1581 = vpop.f32.mrb[0].mxu0
        %1582 = vmatprep.mubr.bf16.mxu0 %v1213
        %1583 = vmatmul.mubr.bf16.gmra.mrb[0].mxu0 %v1212
        %v1584 = vpop.f32.mrb[0].mxu0
        %v1585 = vadd.f32 %v1309, %v1584
        %v1586 = vpop.f32.mrb[0].mxu0
        %v1587 = vpop.f32.mrb[0].mxu0
        %v1588 = vadd.f32 %v1309, %v1587
        %v1589 = vpop.f32.mrb[0].mxu0
        %1590 = vmatprep.mubr.bf16.mxu0 %v1218
        %1591 = vmatmul.mubr.bf16.gmra.mrb[0].mxu0 %v1217
        %v1592 = vpop.f32.mrb[0].mxu0
        %v1593 = vadd.f32 %v1309, %v1592
        %v1594 = vpop.f32.mrb[0].mxu0
        %v1595 = vpop.f32.mrb[0].mxu0
        %v1596 = vadd.f32 %v1309, %v1595
        %v1597 = vpop.f32.mrb[0].mxu0
        %1598 = vmatprep.mubr.bf16.mxu0 %v1223
        %1599 = vmatmul.mubr.bf16.gmra.mrb[0].mxu0 %v1222
        %v1600 = vpop.f32.mrb[0].mxu0
        %v1601 = vadd.f32 %v1309, %v1600
        %v1602 = vpop.f32.mrb[0].mxu0
        %v1603 = vpop.f32.mrb[0].mxu0
        %v1604 = vadd.f32 %v1309, %v1603
        %v1605 = vpop.f32.mrb[0].mxu0
        %1606 = vmatprep.mubr.bf16.mxu0 %v1228
        %1607 = vmatmul.mubr.bf16.gmra.mrb[0].mxu0 %v1227
        %v1608 = vpop.f32.mrb[0].mxu0
        %v1609 = vadd.f32 %v1309, %v1608
        %v1610 = vpop.f32.mrb[0].mxu0
        %v1611 = vpop.f32.mrb[0].mxu0
        %v1612 = vadd.f32 %v1309, %v1611
        %v1613 = vpop.f32.mrb[0].mxu0
        %1614 = vdwg.mxu0
        %1615 = vmatprep.subr.bf16.mxu0 0
        %1616 = vmatpush1.bf16.msra.mxu0 %v1471
        %1617 = vmatprep.subr.bf16.mxu0 0
        %1618 = vmatpush1.bf16.msra.mxu0 %v1472
        %1619 = vmatprep.subr.bf16.mxu0 0
        %1620 = vmatpush1.bf16.msra.mxu0 %v1473
        %1621 = vmatprep.subr.bf16.mxu0 0
        %1622 = vmatpush1.bf16.msra.mxu0 %v1474
        %1623 = vmatprep.subr.bf16.mxu0 0
        %1624 = vmatpush1.bf16.msra.mxu0 %v1475
        %1625 = vmatprep.subr.bf16.mxu0 0
        %1626 = vmatpush1.bf16.msra.mxu0 %v1476
        %1627 = vmatprep.subr.bf16.mxu0 0
        %1628 = vmatpush1.bf16.msra.mxu0 %v1477
        %1629 = vmatprep.subr.bf16.mxu0 0
        %1630 = vmatpush1.bf16.msra.mxu0 %v1478
        %1631 = vmatprep.subr.bf16.mxu0 0
        %1632 = vmatpush1.bf16.msra.mxu0 %v1479
        %1633 = vmatprep.subr.bf16.mxu0 0
        %1634 = vmatpush1.bf16.msra.mxu0 %v1480
        %1635 = vmatprep.subr.bf16.mxu0 0
        %1636 = vmatpush1.bf16.msra.mxu0 %v1481
        %1637 = vmatprep.subr.bf16.mxu0 0
        %1638 = vmatpush1.bf16.msra.mxu0 %v1482
        %1639 = vmatprep.subr.bf16.mxu0 0
        %1640 = vmatpush1.bf16.msra.mxu0 %v1483
        %1641 = vmatprep.subr.bf16.mxu0 0
        %1642 = vmatpush1.bf16.msra.mxu0 %v1484
        %1643 = vmatprep.subr.bf16.mxu0 0
        %1644 = vmatpush1.bf16.msra.mxu0 %v1485
        %1645 = vmatprep.subr.bf16.mxu0 0
        %1646 = vmatpush1.bf16.msra.mxu0 %v1486
        %1647 = vmatprep.mubr.bf16.mxu0 %v1210
        %1648 = vmatmul.mubr.bf16.gmra.mrb[0].mxu0 %v1209
        %v1649 = vpop.f32.mrb[0].mxu0
        %v1650 = vadd.f32 %v1577, %v1649
        %v1651 = vpop.f32.mrb[0].mxu0
        %v1652 = vpop.f32.mrb[0].mxu0
        %v1653 = vadd.f32 %v1580, %v1652
        %v1654 = vpop.f32.mrb[0].mxu0
        %1655 = vmatprep.mubr.bf16.mxu0 %v1215
        %1656 = vmatmul.mubr.bf16.gmra.mrb[0].mxu0 %v1214
        %v1657 = vpop.f32.mrb[0].mxu0
        %v1658 = vadd.f32 %v1585, %v1657
        %v1659 = vpop.f32.mrb[0].mxu0
        %v1660 = vpop.f32.mrb[0].mxu0
        %v1661 = vadd.f32 %v1588, %v1660
        %v1662 = vpop.f32.mrb[0].mxu0
        %1663 = vmatprep.mubr.bf16.mxu0 %v1220
        %1664 = vmatmul.mubr.bf16.gmra.mrb[0].mxu0 %v1219
        %v1665 = vpop.f32.mrb[0].mxu0
        %v1666 = vadd.f32 %v1593, %v1665
        %v1667 = vpop.f32.mrb[0].mxu0
        %v1668 = vpop.f32.mrb[0].mxu0
        %v1669 = vadd.f32 %v1596, %v1668
        %v1670 = vpop.f32.mrb[0].mxu0
        %1671 = vmatprep.mubr.bf16.mxu0 %v1225
        %1672 = vmatmul.mubr.bf16.gmra.mrb[0].mxu0 %v1224
        %v1673 = vpop.f32.mrb[0].mxu0
        %v1674 = vadd.f32 %v1601, %v1673
        %v1675 = vpop.f32.mrb[0].mxu0
        %v1676 = vpop.f32.mrb[0].mxu0
        %v1677 = vadd.f32 %v1604, %v1676
        %v1678 = vpop.f32.mrb[0].mxu0
        %1679 = vmatprep.mubr.bf16.mxu0 %v1230
        %1680 = vmatmul.mubr.bf16.gmra.mrb[0].mxu0 %v1229
        %v1681 = vpop.f32.mrb[0].mxu0
        %v1682 = vadd.f32 %v1609, %v1681
        %v1683 = vpop.f32.mrb[0].mxu0
        %v1684 = vpop.f32.mrb[0].mxu0
        %v1685 = vadd.f32 %v1612, %v1684
        %v1686 = vpop.f32.mrb[0].mxu0
        %1687 = vdwg.mxu0
        %1688 = vmatprep.subr.bf16.mxu0 0
        %1689 = vmatpush1.bf16.msra.mxu0 %v1487
        %1690 = vmatprep.subr.bf16.mxu0 0
        %1691 = vmatpush1.bf16.msra.mxu0 %v1488
        %1692 = vmatprep.subr.bf16.mxu0 0
        %1693 = vmatpush1.bf16.msra.mxu0 %v1489
        %1694 = vmatprep.subr.bf16.mxu0 0
        %1695 = vmatpush1.bf16.msra.mxu0 %v1490
        %1696 = vmatprep.subr.bf16.mxu0 0
        %1697 = vmatpush1.bf16.msra.mxu0 0
        %1698 = vmatprep.subr.bf16.mxu0 0
        %1699 = vmatpush1.bf16.msra.mxu0 0
        %1700 = vmatprep.subr.bf16.mxu0 0
        %1701 = vmatpush1.bf16.msra.mxu0 0
        %1702 = vmatprep.subr.bf16.mxu0 0
        %1703 = vmatpush1.bf16.msra.mxu0 0
        %1704 = vmatprep.subr.bf16.mxu0 0
        %1705 = vmatpush1.bf16.msra.mxu0 0
        %1706 = vmatprep.subr.bf16.mxu0 0
        %1707 = vmatpush1.bf16.msra.mxu0 0
        %1708 = vmatprep.subr.bf16.mxu0 0
        %1709 = vmatpush1.bf16.msra.mxu0 0
        %1710 = vmatprep.subr.bf16.mxu0 0
        %1711 = vmatpush1.bf16.msra.mxu0 0
        %1712 = vmatprep.subr.bf16.mxu0 0
        %1713 = vmatpush1.bf16.msra.mxu0 0
        %1714 = vmatprep.subr.bf16.mxu0 0
        %1715 = vmatpush1.bf16.msra.mxu0 0
        %1716 = vmatprep.subr.bf16.mxu0 0
        %1717 = vmatpush1.bf16.msra.mxu0 0
        %1718 = vmatprep.subr.bf16.mxu0 0
        %1719 = vmatpush1.bf16.msra.mxu0 0
        %1720 = vmatprep.mubr.bf16.mxu0 0
        %1721 = vmatmul.mubr.bf16.gmra.mrb[0].mxu0 %v1528
        %v1722 = vpop.f32.mrb[0].mxu0
        %v1723 = vadd.f32 %v1650, %v1722
        %v1724 = vpop.f32.mrb[0].mxu0
        %v1725 = vpop.f32.mrb[0].mxu0
        %v1726 = vadd.f32 %v1653, %v1725
        %v1727 = vpop.f32.mrb[0].mxu0
        %1728 = vmatprep.mubr.bf16.mxu0 0
        %1729 = vmatmul.mubr.bf16.gmra.mrb[0].mxu0 %v1531
        %v1730 = vpop.f32.mrb[0].mxu0
        %v1731 = vadd.f32 %v1658, %v1730
        %v1732 = vpop.f32.mrb[0].mxu0
        %v1733 = vpop.f32.mrb[0].mxu0
        %v1734 = vadd.f32 %v1661, %v1733
        %v1735 = vpop.f32.mrb[0].mxu0
        %1736 = vmatprep.mubr.bf16.mxu0 0
        %1737 = vmatmul.mubr.bf16.gmra.mrb[0].mxu0 %v1534
        %v1738 = vpop.f32.mrb[0].mxu0
        %v1739 = vadd.f32 %v1666, %v1738
        %v1740 = vpop.f32.mrb[0].mxu0
        %v1741 = vpop.f32.mrb[0].mxu0
        %v1742 = vadd.f32 %v1669, %v1741
        %v1743 = vpop.f32.mrb[0].mxu0
        %1744 = vmatprep.mubr.bf16.mxu0 0
        %1745 = vmatmul.mubr.bf16.gmra.mrb[0].mxu0 %v1537
        %v1746 = vpop.f32.mrb[0].mxu0
        %v1747 = vadd.f32 %v1674, %v1746
        %v1748 = vpop.f32.mrb[0].mxu0
        %v1749 = vpop.f32.mrb[0].mxu0
        %v1750 = vadd.f32 %v1677, %v1749
        %v1751 = vpop.f32.mrb[0].mxu0
        %1752 = vmatprep.mubr.bf16.mxu0 0
        %1753 = vmatmul.mubr.bf16.gmra.mrb[0].mxu0 %v1540
        %v1754 = vpop.f32.mrb[0].mxu0
        %v1755 = vadd.f32 %v1682, %v1754
        %v1756 = vpop.f32.mrb[0].mxu0
        %v1757 = vpop.f32.mrb[0].mxu0
        %v1758 = vadd.f32 %v1685, %v1757
        %v1759 = vpop.f32.mrb[0].mxu0
        %1760 = vdwg.mxu0
        %1761 = vst [vmem:[%s232] sm:$0xff] %v1723
        %1762 = vst [vmem:[%s232 + $0x8] sm:$0xff] %v1726
        %1763 = vst [vmem:[%s232 + $0x10] sm:$0xff] %v1731
        %1764 = vst [vmem:[%s232 + $0x18] sm:$0xff] %v1734
        %1765 = vst [vmem:[%s232 + $0x20] sm:$0xff] %v1739
        %1766 = vst [vmem:[%s232 + $0x28] sm:$0xff] %v1742
        %1767 = vst [vmem:[%s232 + $0x30] sm:$0xff] %v1747
        %1768 = vst [vmem:[%s232 + $0x38] sm:$0xff] %v1750
        %1769 = vst [vmem:[%s232 + $0x40] sm:$0xff] %v1755
        %1770 = vst [vmem:[%s232 + $0x48] sm:$0xff] %v1758
        %s1771 = sand.u32 %s138, 1
        %s1772 = scalar_lea.sflag [#allocation8], %s1771
        %s1773 = sand.u32 %s138, 1
        %s1774 = smul.addr %s1773, 80
        %s1775 = scalar_lea.vmem [#allocation9], %s1774
        // Predicated region
        $region45: #{tpu_custom_call.1} parent=39 // pred_check
          %p1776 = pneg %p148
        $region46: #{tpu_custom_call.1} parent=39 // pred_check_branch
          %1778 = sbr.rel (%p1776) target = $region48
        $region47: #{tpu_custom_call.1} parent=39 // pred_region
          %s1780 = ssub.s32 1280, 1280
          %1781 = vsyncadd %s1772, %s1780
          %s1782 = smul.addr %s20, 10
          %s1783 = smul.addr %s1782, 128
          %s1784 = scalar_lea.hbm %s5, %s1783
          %s1785 = sshll.u32 %s1775, 4
          %s1786 = int_to_ptr.vmem [resolvable:$true] %s1785
          %1791 = dma.vmem_to_hbm [thread:$0]  %s1786, 1280, %s1784, %s1772, 128, 128, 8
        $region48: #{tpu_custom_call.1} parent=39 // pred_fallthru
          _
      $region40: #{tpu_custom_call.1} parent=5 // pred_fallthru
        _
      %p1792 = scmp.le.s32.totalorder 2, %s15
      // Predicated region
      $region49: #{tpu_custom_call.1} parent=5 // pred_check
        %p1793 = pneg %p1792
      $region50: #{tpu_custom_call.1} parent=5 // pred_check_branch
        %1795 = sbr.rel (%p1793) target = $region52
      $region51: #{tpu_custom_call.1} parent=5 // pred_region
        %s1796 = ssub.s32 %s15, 2
        // Predicated region
        $region53: #{tpu_custom_call.1} parent=51 // pred_check
          %p1797 = pneg %p154
        $region54: #{tpu_custom_call.1} parent=51 // pred_check_branch
          %1799 = sbr.rel (%p1797) target = $region56
        $region55: #{tpu_custom_call.1} parent=51 // pred_region
          %s1800 = sand.u32 %s139, 1
          %s1801 = scalar_lea.sflag [#allocation8], %s1800
          %s1802 = sand.u32 %s139, 1
          %s1803 = smul.addr %s1802, 80
          %s1804 = scalar_lea.vmem [#allocation9], %s1803
          %1805 = dma.done %s1801, 1280
        $region56: #{tpu_custom_call.1} parent=51 // pred_fallthru
          _
      $region52: #{tpu_custom_call.1} parent=5 // pred_fallthru
        _
    $region6: #{tpu_custom_call.1} parent=1 // loop_footer
      %s19 = sadd.s32 1, %s15
    $region7: #{tpu_custom_call.1} parent=1 // loop_footer_branch
      %14 = sbr.rel target = $region3
    $region8: #{tpu_custom_call.1} parent=1 // loop_exit
      _
    %1806 = vsyncpa [#allocation7], 1
    %s1807 = scalar_lea.sflag [#allocation7], 1
    %1808 = vsyncpa %s1807, 1
    %1809 = vsyncpa [#allocation8], 1
    %s1810 = scalar_lea.sflag [#allocation8], 1
    %1811 = vsyncpa %s1810, 1

</llo_original>
